<compile_context>
chip_gen: v6e
topology: v6e:2x2x1
jax: 0.10.0
libtpu: 0.0.40
codegen_flags: <defaults>
</compile_context>

<pallas_src>
import functools

import numpy as np
import jax
import jax.numpy as jnp
from jax import lax
from jax.experimental import pallas as pl
from jax.experimental.pallas import tpu as pltpu

BN_EPS = 1e-5
LANE = 128


def _round_up(v, m):
    return ((v + m - 1) // m) * m


# ----------------------------- Pallas kernels -----------------------------

def _convmm_kernel(relu, has_skip, w_ref, x_ref, b_ref, *rest):
    # out^T = W^T @ patches^T + bias (+ skip) (+ ReLU); lane axis = M = N*OH*OW.
    if has_skip:
        skip_ref, o_ref = rest
    else:
        (o_ref,) = rest
    acc = jnp.dot(w_ref[...], x_ref[...], preferred_element_type=jnp.float32)
    out = acc + b_ref[...]
    if has_skip:
        out = out + skip_ref[...]
    if relu:
        out = jnp.maximum(out, 0.0)
    o_ref[...] = out


def matmul_bias_t(w_t_bf16, x_t_bf16, bias, skip_t, relu):
    """(Cout,K)bf16 @ (K,M)bf16 -> (Cout,M)f32, + bias[:,None] (+ skip) (+ ReLU)."""
    cout, K = w_t_bf16.shape
    M = x_t_bf16.shape[1]
    Mp = _round_up(M, LANE)
    if Mp != M:  # pad lane axis so every block is lane-aligned (no ragged full-block)
        x_t_bf16 = jnp.pad(x_t_bf16, ((0, 0), (0, Mp - M)))
        if skip_t is not None:
            skip_t = jnp.pad(skip_t, ((0, 0), (0, Mp - M)))
    tm = 256 if Mp % 256 == 0 else LANE
    grid = (Mp // tm,)

    in_specs = [
        pl.BlockSpec((cout, K), lambda i: (0, 0)),
        pl.BlockSpec((K, tm), lambda i: (0, i)),
        pl.BlockSpec((cout, 1), lambda i: (0, 0)),
    ]
    args = [w_t_bf16, x_t_bf16, bias.reshape(cout, 1)]
    has_skip = skip_t is not None
    if has_skip:
        in_specs.append(pl.BlockSpec((cout, tm), lambda i: (0, i)))
        args.append(skip_t)

    flops = 2 * cout * K * Mp
    bytes_accessed = (cout * K * 2 + K * Mp * 2 + cout * 4
                      + (cout * Mp * 4 if has_skip else 0) + cout * Mp * 4)

    out = pl.pallas_call(
        functools.partial(_convmm_kernel, relu, has_skip),
        out_shape=jax.ShapeDtypeStruct((cout, Mp), jnp.float32),
        grid=grid,
        in_specs=in_specs,
        out_specs=pl.BlockSpec((cout, tm), lambda i: (0, i)),
        compiler_params=pltpu.CompilerParams(dimension_semantics=("parallel",)),
        cost_estimate=pl.CostEstimate(flops=flops, transcendentals=0,
                                      bytes_accessed=bytes_accessed),
    )(*args)
    return out[:, :M] if Mp != M else out


def _pool_linear_kernel(f_ref, w_ref, b_ref, o_ref):
    # AdaptiveAvgPool2d((1,1)) + Flatten + Linear (no BN, identity act).
    pooled = jnp.mean(f_ref[...], axis=1)  # (N, C)
    o_ref[...] = (
        jnp.dot(pooled, w_ref[...], preferred_element_type=jnp.float32) + b_ref[...]
    )


def pool_linear(feat_cnhw, w, b):
    c, n, h, wd = feat_cnhw.shape
    f = jnp.transpose(feat_cnhw.reshape(c, n, h * wd), (1, 2, 0))  # (N, HW, C)
    nc = w.shape[1]
    return pl.pallas_call(
        _pool_linear_kernel,
        out_shape=jax.ShapeDtypeStruct((n, nc), jnp.float32),
        grid=(1,),
        in_specs=[
            pl.BlockSpec((n, h * wd, c), lambda i: (0, 0, 0)),
            pl.BlockSpec((c, nc), lambda i: (0, 0)),
            pl.BlockSpec((1, nc), lambda i: (0, 0)),
        ],
        out_specs=pl.BlockSpec((n, nc), lambda i: (0, 0)),
    )(f, w, b.reshape(1, nc))


# ----------------------------- conv lowering (glue, fused by jit) -----------------------------

def im2col_t(x_cnhw, kh, kw, stride, pad):
    """Transposed im2col: (KH*KW*Cin, N*OH*OW), K ordered (i, j, c)."""
    x = x_cnhw
    if pad:
        x = jnp.pad(x, ((0, 0), (0, 0), (pad, pad), (pad, pad)))
    c, n, h, w = x.shape
    oh = (h - kh) // stride + 1
    ow = (w - kw) // stride + 1
    cols = [x[:, :, i:i + stride * oh:stride, j:j + stride * ow:stride]
            for i in range(kh) for j in range(kw)]
    patches = jnp.concatenate(cols, axis=0)          # (kh*kw*c, n, oh, ow)
    return patches.reshape(kh * kw * c, n * oh * ow), oh, ow


def fold_bn(conv_b, bn, cout):
    if bn is None:
        return jnp.ones((cout,), jnp.float32), conv_b
    gamma, beta, mean, var = bn
    s = gamma / jnp.sqrt(var + BN_EPS)
    return s, beta - mean * s + conv_b * s


def conv_affine(x_cnhw, w_oihw, conv_b, bn, stride, pad, relu, skip=None):
    """conv (+ folded eval-BN) (+ residual skip) (+ ReLU) on (C,N,H,W) activations."""
    cout, cin, kh, kw = w_oihw.shape
    n = x_cnhw.shape[1]
    patches_t, oh, ow = im2col_t(x_cnhw, kh, kw, stride, pad)
    w_t = jnp.transpose(w_oihw, (0, 2, 3, 1)).reshape(cout, kh * kw * cin)
    scale, bias = fold_bn(conv_b, bn, cout)
    w_eff = (w_t * scale[:, None]).astype(jnp.bfloat16)   # BN scale folded into weights
    skip_flat = None if skip is None else skip.reshape(cout, -1)
    out_t = matmul_bias_t(w_eff, patches_t.astype(jnp.bfloat16), bias,
                          skip_flat, relu)
    return out_t.reshape(cout, n, oh, ow)


# ----------------------------- blocks -----------------------------

def convblock_fwd(x, p):
    return conv_affine(x, p["w"], p["b"], p["bn"], p["stride"], p["pad"], relu=True)


def resblock_fwd(x, p):
    skip = conv_affine(x, p["ws"], p["bs"], None, p["stride"], 0, relu=False)
    h = conv_affine(x, p["w1"], p["b1"], p["bn1"], p["stride"], 1, relu=True)
    # conv2 + bn2 + residual add + ReLU fused in one kernel.
    return conv_affine(h, p["w2"], p["b2"], p["bn2"], 1, 1, relu=True, skip=skip)


def resblock2_fwd(x, p):
    skip = conv_affine(x, p["ws"], p["bs"], None, p["stride"], 0, relu=False)
    h = conv_affine(x, p["w1"], p["b1"], p["bn1"], 1, 0, relu=True)
    h = conv_affine(h, p["wM"], p["bM"], p["bnM"], p["stride"], 1, relu=True)
    # conv2 + bn2 + residual add + ReLU fused in one kernel.
    return conv_affine(h, p["w2"], p["b2"], p["bn2"], 1, 0, relu=True, skip=skip)


FWD = {"conv": convblock_fwd, "res": resblock_fwd, "res2": resblock2_fwd}


def sdn_forward(x_nchw, feature_params, classifier_params):
    x = jnp.transpose(x_nchw, (1, 0, 2, 3))  # NCHW -> (C, N, H, W)
    feats = []
    for p in feature_params:
        x = FWD[p["kind"]](x, p)
        feats.append(x)
    out = {}
    for idx, cp in classifier_params.items():
        out[idx] = pool_linear(feats[idx], cp["w"], cp["b"])
    return out


# ----------------------------- pure-JAX reference -----------------------------

def ref_conv_affine(x, w_oihw, conv_b, bn, stride, pad, relu):
    w_hwio = jnp.transpose(w_oihw, (2, 3, 1, 0))
    y = lax.conv_general_dilated(
        x, w_hwio, (stride, stride), [(pad, pad), (pad, pad)],
        dimension_numbers=("NHWC", "HWIO", "NHWC"),
        precision=lax.Precision.HIGHEST,
    ) + conv_b
    if bn is not None:
        gamma, beta, mean, var = bn
        y = (y - mean) / jnp.sqrt(var + BN_EPS) * gamma + beta
    if relu:
        y = jnp.maximum(y, 0.0)
    return y


def ref_sdn_forward(x_nchw, feature_params, classifier_params):
    x = jnp.transpose(x_nchw, (0, 2, 3, 1))
    feats = []
    for p in feature_params:
        if p["kind"] == "conv":
            x = ref_conv_affine(x, p["w"], p["b"], p["bn"], p["stride"], p["pad"], True)
        elif p["kind"] == "res":
            skip = ref_conv_affine(x, p["ws"], p["bs"], None, p["stride"], 0, False)
            h = ref_conv_affine(x, p["w1"], p["b1"], p["bn1"], p["stride"], 1, True)
            h = ref_conv_affine(h, p["w2"], p["b2"], p["bn2"], 1, 1, False)
            x = jnp.maximum(h + skip, 0.0)
        else:  # res2
            skip = ref_conv_affine(x, p["ws"], p["bs"], None, p["stride"], 0, False)
            h = ref_conv_affine(x, p["w1"], p["b1"], p["bn1"], 1, 0, True)
            h = ref_conv_affine(h, p["wM"], p["bM"], p["bnM"], p["stride"], 1, True)
            h = ref_conv_affine(h, p["w2"], p["b2"], p["bn2"], 1, 0, False)
            x = jnp.maximum(h + skip, 0.0)
        feats.append(x)
    out = {}
    for idx, cp in classifier_params.items():
        pooled = jnp.mean(feats[idx], axis=(1, 2))
        out[idx] = pooled @ cp["w"] + cp["b"]
    return out


# ----------------------------- deterministic params -----------------------------

def init_conv(key, cin, cout, k):
    kw_, kb_ = jax.random.split(key)
    fan = cin * k * k
    w = jax.random.normal(kw_, (cout, cin, k, k), jnp.float32) / np.sqrt(fan)
    b = 0.1 * jax.random.normal(kb_, (cout,), jnp.float32)
    return w, b


def init_bn(key, c):
    k1, k2, k3, k4 = jax.random.split(key, 4)
    gamma = 1.0 + 0.1 * jax.random.normal(k1, (c,), jnp.float32)
    beta = 0.1 * jax.random.normal(k2, (c,), jnp.float32)
    mean = 0.1 * jax.random.normal(k3, (c,), jnp.float32)
    var = 1.0 + 0.1 * jnp.abs(jax.random.normal(k4, (c,), jnp.float32))
    return (gamma, beta, mean, var)


def build_params(key, num_classes):
    keys = jax.random.split(key, 32)
    ki = iter(keys)

    # feature[0] = ConvBlock(4, 8, 3, stride=1, padding=1)
    w0, b0 = init_conv(next(ki), 4, 8, 3)
    layer0 = dict(kind="conv", w=w0, b=b0, bn=init_bn(next(ki), 8), stride=1, pad=1)

    # feature[1] = ResBlock(8, 16, stride=2)
    w1, b1 = init_conv(next(ki), 8, 16, 3)
    w2, b2 = init_conv(next(ki), 16, 16, 3)
    ws, bs = init_conv(next(ki), 8, 16, 1)
    layer1 = dict(kind="res", w1=w1, b1=b1, bn1=init_bn(next(ki), 16),
                  w2=w2, b2=b2, bn2=init_bn(next(ki), 16),
                  ws=ws, bs=bs, stride=2)

    # feature[2] = ResBlock2(16, 8, 16, stride=2)
    wa, ba = init_conv(next(ki), 16, 8, 1)
    wm, bm = init_conv(next(ki), 8, 8, 3)
    wb, bb = init_conv(next(ki), 8, 16, 1)
    wsk, bsk = init_conv(next(ki), 16, 16, 1)
    layer2 = dict(kind="res2", w1=wa, b1=ba, bn1=init_bn(next(ki), 8),
                  wM=wm, bM=bm, bnM=init_bn(next(ki), 8),
                  w2=wb, b2=bb, bn2=init_bn(next(ki), 16),
                  ws=wsk, bs=bsk, stride=2)

    feature_params = [layer0, layer1, layer2]

    # classifiers at indices 0, 1, 2 -> AvgPool + Flatten + Linear(channels, num_classes)
    chans = {0: 8, 1: 16, 2: 16}
    classifier_params = {}
    for idx, c in chans.items():
        kw_, kb_ = jax.random.split(next(ki))
        w = jax.random.normal(kw_, (c, num_classes), jnp.float32) / np.sqrt(c)
        b = 0.1 * jax.random.normal(kb_, (num_classes,), jnp.float32)
        classifier_params[idx] = dict(w=w, b=b)

    return feature_params, classifier_params


# ----------------------------- main -----------------------------

if __name__ == "__main__":
    num_classes = 10
    key = jax.random.PRNGKey(0)
    kx, kp = jax.random.split(key)
    x = jax.random.normal(kx, (2, 4, 16, 16), jnp.float32)  # NCHW like PyTorch

    feature_params, classifier_params = build_params(kp, num_classes)

    # Whole forward jitted into one executable (params captured as constants).
    fwd = jax.jit(lambda xx: sdn_forward(xx, feature_params, classifier_params))
    out = fwd(x)
    out = {k: jax.block_until_ready(v) for k, v in out.items()}

    ref_fwd = jax.jit(lambda xx: ref_sdn_forward(xx, feature_params, classifier_params))
    ref = ref_fwd(x)

    # Kernel uses bf16 MXU operands (f32 accumulation), reference is f32 HIGHEST.
    for idx in sorted(out):
        assert out[idx].shape == (2, num_classes)
        np.testing.assert_allclose(np.asarray(out[idx]), np.asarray(ref[idx]),
                                   rtol=2e-2, atol=2e-2)

    print("KERNEL_OK")
</pallas_src>

<mosaic_0001>
module attributes {stable_mosaic.version = 11 : i64} {
  func.func @_convmm_kernel(%arg0: i32, %arg1: memref<8x36xbf16, #tpu.memory_space<vmem>>, %arg2: memref<36x256xbf16, #tpu.memory_space<vmem>>, %arg3: memref<8x1xf32, #tpu.memory_space<vmem>>, %arg4: memref<8x256xf32, #tpu.memory_space<vmem>>) attributes {dimension_semantics = [#tpu.dimension_semantics<parallel>], iteration_bounds = array<i64: 2>, scalar_prefetch = 0 : i64, scratch_operands = 0 : i64, tpu.core_type = #tpu.core_type<tc>, window_params = [{pipeline_mode = #tpu.pipeline_mode<synchronous>, transform_indices = @transform_0, window_bounds = array<i64: 8, 36>}, {transform_indices = @transform_1, window_bounds = array<i64: 36, 256>}, {pipeline_mode = #tpu.pipeline_mode<synchronous>, transform_indices = @transform_2, window_bounds = array<i64: 8, 1>}, {transform_indices = @transform_3, window_bounds = array<i64: 8, 256>}]} {
    %c0 = arith.constant 0 : index
    %c0_0 = arith.constant 0 : index
    %0 = vector.load %arg1[%c0, %c0_0] : memref<8x36xbf16, #tpu.memory_space<vmem>>, vector<8x36xbf16>
    %c0_1 = arith.constant 0 : index
    %c0_2 = arith.constant 0 : index
    %1 = vector.load %arg2[%c0_1, %c0_2] : memref<36x256xbf16, #tpu.memory_space<vmem>>, vector<36x256xbf16>
    %cst = arith.constant dense<0.000000e+00> : vector<8x256xf32>
    %2 = tpu.matmul %0, %1, %cst {dimension_numbers = #tpu.dot_dimension_numbers<[1], [0], [0], [1], [0, 0, 1, 1], [], []>} : vector<8x36xbf16>, vector<36x256xbf16>, vector<8x256xf32> -> vector<8x256xf32>
    %c0_3 = arith.constant 0 : index
    %c0_4 = arith.constant 0 : index
    %3 = vector.load %arg3[%c0_3, %c0_4] : memref<8x1xf32, #tpu.memory_space<vmem>>, vector<8x1xf32>
    %4 = vector.broadcast %3 : vector<8x1xf32> to vector<8x256xf32>
    %5 = arith.addf %2, %4 : vector<8x256xf32>
    %cst_5 = arith.constant 0.000000e+00 : f32
    %6 = vector.broadcast %cst_5 : f32 to vector<8x256xf32>
    %7 = arith.maximumf %5, %6 : vector<8x256xf32>
    %c0_6 = arith.constant 0 : index
    %c0_7 = arith.constant 0 : index
    %8 = vector.load %arg4[%c0_6, %c0_7] : memref<8x256xf32, #tpu.memory_space<vmem>>, vector<8x256xf32>
    tpu.vector_store %arg4[%c0_6, %c0_7], %7 {strides = array<i32>} : memref<8x256xf32, #tpu.memory_space<vmem>>, vector<8x256xf32>,
    return
  }
  func.func @transform_0(%arg0: i32) -> (i32, i32) {
    %c0_i32 = arith.constant 0 : i32
    %c0_i32_0 = arith.constant 0 : i32
    %c0_i32_1 = arith.constant 0 : i32
    return %c0_i32, %c0_i32_0 : i32, i32
  }
  func.func @transform_1(%arg0: i32) -> (i32, i32) {
    %c0_i32 = arith.constant 0 : i32
    %c0_i32_0 = arith.constant 0 : i32
    return %c0_i32, %arg0 : i32, i32
  }
  func.func @transform_2(%arg0: i32) -> (i32, i32) {
    %c0_i32 = arith.constant 0 : i32
    %c0_i32_0 = arith.constant 0 : i32
    %c0_i32_1 = arith.constant 0 : i32
    return %c0_i32, %c0_i32_0 : i32, i32
  }
  func.func @transform_3(%arg0: i32) -> (i32, i32) {
    %c0_i32 = arith.constant 0 : i32
    %c0_i32_0 = arith.constant 0 : i32
    return %c0_i32, %arg0 : i32, i32
  }
}

module attributes {stable_mosaic.version = 11 : i64} {
  func.func @_convmm_kernel(%arg0: i32, %arg1: memref<16x8xbf16, #tpu.memory_space<vmem>>, %arg2: memref<8x128xbf16, #tpu.memory_space<vmem>>, %arg3: memref<16x1xf32, #tpu.memory_space<vmem>>, %arg4: memref<16x128xf32, #tpu.memory_space<vmem>>) attributes {dimension_semantics = [#tpu.dimension_semantics<parallel>], iteration_bounds = array<i64: 1>, scalar_prefetch = 0 : i64, scratch_operands = 0 : i64, tpu.core_type = #tpu.core_type<tc>, window_params = [{pipeline_mode = #tpu.pipeline_mode<synchronous>, transform_indices = @transform_0, window_bounds = array<i64: 16, 8>}, {transform_indices = @transform_1, window_bounds = array<i64: 8, 128>}, {pipeline_mode = #tpu.pipeline_mode<synchronous>, transform_indices = @transform_2, window_bounds = array<i64: 16, 1>}, {transform_indices = @transform_3, window_bounds = array<i64: 16, 128>}]} {
    %c0 = arith.constant 0 : index
    %c0_0 = arith.constant 0 : index
    %0 = vector.load %arg1[%c0, %c0_0] : memref<16x8xbf16, #tpu.memory_space<vmem>>, vector<16x8xbf16>
    %c0_1 = arith.constant 0 : index
    %c0_2 = arith.constant 0 : index
    %1 = vector.load %arg2[%c0_1, %c0_2] : memref<8x128xbf16, #tpu.memory_space<vmem>>, vector<8x128xbf16>
    %cst = arith.constant dense<0.000000e+00> : vector<16x128xf32>
    %2 = tpu.matmul %0, %1, %cst {dimension_numbers = #tpu.dot_dimension_numbers<[1], [0], [0], [1], [0, 0, 1, 1], [], []>} : vector<16x8xbf16>, vector<8x128xbf16>, vector<16x128xf32> -> vector<16x128xf32>
    %c0_3 = arith.constant 0 : index
    %c0_4 = arith.constant 0 : index
    %3 = vector.load %arg3[%c0_3, %c0_4] : memref<16x1xf32, #tpu.memory_space<vmem>>, vector<16x1xf32>
    %4 = vector.broadcast %3 : vector<16x1xf32> to vector<16x128xf32>
    %5 = arith.addf %2, %4 : vector<16x128xf32>
    %c0_5 = arith.constant 0 : index
    %c0_6 = arith.constant 0 : index
    %6 = vector.load %arg4[%c0_5, %c0_6] : memref<16x128xf32, #tpu.memory_space<vmem>>, vector<16x128xf32>
    tpu.vector_store %arg4[%c0_5, %c0_6], %5 {strides = array<i32>} : memref<16x128xf32, #tpu.memory_space<vmem>>, vector<16x128xf32>,
    return
  }
  func.func @transform_0(%arg0: i32) -> (i32, i32) {
    %c0_i32 = arith.constant 0 : i32
    %c0_i32_0 = arith.constant 0 : i32
    %c0_i32_1 = arith.constant 0 : i32
    return %c0_i32, %c0_i32_0 : i32, i32
  }
  func.func @transform_1(%arg0: i32) -> (i32, i32) {
    %c0_i32 = arith.constant 0 : i32
    %c0_i32_0 = arith.constant 0 : i32
    return %c0_i32, %arg0 : i32, i32
  }
  func.func @transform_2(%arg0: i32) -> (i32, i32) {
    %c0_i32 = arith.constant 0 : i32
    %c0_i32_0 = arith.constant 0 : i32
    %c0_i32_1 = arith.constant 0 : i32
    return %c0_i32, %c0_i32_0 : i32, i32
  }
  func.func @transform_3(%arg0: i32) -> (i32, i32) {
    %c0_i32 = arith.constant 0 : i32
    %c0_i32_0 = arith.constant 0 : i32
    return %c0_i32, %arg0 : i32, i32
  }
}

module attributes {stable_mosaic.version = 11 : i64} {
  func.func @_convmm_kernel(%arg0: i32, %arg1: memref<16x72xbf16, #tpu.memory_space<vmem>>, %arg2: memref<72x128xbf16, #tpu.memory_space<vmem>>, %arg3: memref<16x1xf32, #tpu.memory_space<vmem>>, %arg4: memref<16x128xf32, #tpu.memory_space<vmem>>) attributes {dimension_semantics = [#tpu.dimension_semantics<parallel>], iteration_bounds = array<i64: 1>, scalar_prefetch = 0 : i64, scratch_operands = 0 : i64, tpu.core_type = #tpu.core_type<tc>, window_params = [{pipeline_mode = #tpu.pipeline_mode<synchronous>, transform_indices = @transform_0, window_bounds = array<i64: 16, 72>}, {transform_indices = @transform_1, window_bounds = array<i64: 72, 128>}, {pipeline_mode = #tpu.pipeline_mode<synchronous>, transform_indices = @transform_2, window_bounds = array<i64: 16, 1>}, {transform_indices = @transform_3, window_bounds = array<i64: 16, 128>}]} {
    %c0 = arith.constant 0 : index
    %c0_0 = arith.constant 0 : index
    %0 = vector.load %arg1[%c0, %c0_0] : memref<16x72xbf16, #tpu.memory_space<vmem>>, vector<16x72xbf16>
    %c0_1 = arith.constant 0 : index
    %c0_2 = arith.constant 0 : index
    %1 = vector.load %arg2[%c0_1, %c0_2] : memref<72x128xbf16, #tpu.memory_space<vmem>>, vector<72x128xbf16>
    %cst = arith.constant dense<0.000000e+00> : vector<16x128xf32>
    %2 = tpu.matmul %0, %1, %cst {dimension_numbers = #tpu.dot_dimension_numbers<[1], [0], [0], [1], [0, 0, 1, 1], [], []>} : vector<16x72xbf16>, vector<72x128xbf16>, vector<16x128xf32> -> vector<16x128xf32>
    %c0_3 = arith.constant 0 : index
    %c0_4 = arith.constant 0 : index
    %3 = vector.load %arg3[%c0_3, %c0_4] : memref<16x1xf32, #tpu.memory_space<vmem>>, vector<16x1xf32>
    %4 = vector.broadcast %3 : vector<16x1xf32> to vector<16x128xf32>
    %5 = arith.addf %2, %4 : vector<16x128xf32>
    %cst_5 = arith.constant 0.000000e+00 : f32
    %6 = vector.broadcast %cst_5 : f32 to vector<16x128xf32>
    %7 = arith.maximumf %5, %6 : vector<16x128xf32>
    %c0_6 = arith.constant 0 : index
    %c0_7 = arith.constant 0 : index
    %8 = vector.load %arg4[%c0_6, %c0_7] : memref<16x128xf32, #tpu.memory_space<vmem>>, vector<16x128xf32>
    tpu.vector_store %arg4[%c0_6, %c0_7], %7 {strides = array<i32>} : memref<16x128xf32, #tpu.memory_space<vmem>>, vector<16x128xf32>,
    return
  }
  func.func @transform_0(%arg0: i32) -> (i32, i32) {
    %c0_i32 = arith.constant 0 : i32
    %c0_i32_0 = arith.constant 0 : i32
    %c0_i32_1 = arith.constant 0 : i32
    return %c0_i32, %c0_i32_0 : i32, i32
  }
  func.func @transform_1(%arg0: i32) -> (i32, i32) {
    %c0_i32 = arith.constant 0 : i32
    %c0_i32_0 = arith.constant 0 : i32
    return %c0_i32, %arg0 : i32, i32
  }
  func.func @transform_2(%arg0: i32) -> (i32, i32) {
    %c0_i32 = arith.constant 0 : i32
    %c0_i32_0 = arith.constant 0 : i32
    %c0_i32_1 = arith.constant 0 : i32
    return %c0_i32, %c0_i32_0 : i32, i32
  }
  func.func @transform_3(%arg0: i32) -> (i32, i32) {
    %c0_i32 = arith.constant 0 : i32
    %c0_i32_0 = arith.constant 0 : i32
    return %c0_i32, %arg0 : i32, i32
  }
}

module attributes {stable_mosaic.version = 11 : i64} {
  func.func @_convmm_kernel(%arg0: i32, %arg1: memref<16x144xbf16, #tpu.memory_space<vmem>>, %arg2: memref<144x128xbf16, #tpu.memory_space<vmem>>, %arg3: memref<16x1xf32, #tpu.memory_space<vmem>>, %arg4: memref<16x128xf32, #tpu.memory_space<vmem>>, %arg5: memref<16x128xf32, #tpu.memory_space<vmem>>) attributes {dimension_semantics = [#tpu.dimension_semantics<parallel>], iteration_bounds = array<i64: 1>, scalar_prefetch = 0 : i64, scratch_operands = 0 : i64, tpu.core_type = #tpu.core_type<tc>, window_params = [{pipeline_mode = #tpu.pipeline_mode<synchronous>, transform_indices = @transform_0, window_bounds = array<i64: 16, 144>}, {transform_indices = @transform_1, window_bounds = array<i64: 144, 128>}, {pipeline_mode = #tpu.pipeline_mode<synchronous>, transform_indices = @transform_2, window_bounds = array<i64: 16, 1>}, {transform_indices = @transform_3, window_bounds = array<i64: 16, 128>}, {transform_indices = @transform_4, window_bounds = array<i64: 16, 128>}]} {
    %c0 = arith.constant 0 : index
    %c0_0 = arith.constant 0 : index
    %0 = vector.load %arg1[%c0, %c0_0] : memref<16x144xbf16, #tpu.memory_space<vmem>>, vector<16x144xbf16>
    %c0_1 = arith.constant 0 : index
    %c0_2 = arith.constant 0 : index
    %1 = vector.load %arg2[%c0_1, %c0_2] : memref<144x128xbf16, #tpu.memory_space<vmem>>, vector<144x128xbf16>
    %cst = arith.constant dense<0.000000e+00> : vector<16x128xf32>
    %2 = tpu.matmul %0, %1, %cst {dimension_numbers = #tpu.dot_dimension_numbers<[1], [0], [0], [1], [0, 0, 1, 1], [], []>} : vector<16x144xbf16>, vector<144x128xbf16>, vector<16x128xf32> -> vector<16x128xf32>
    %c0_3 = arith.constant 0 : index
    %c0_4 = arith.constant 0 : index
    %3 = vector.load %arg3[%c0_3, %c0_4] : memref<16x1xf32, #tpu.memory_space<vmem>>, vector<16x1xf32>
    %4 = vector.broadcast %3 : vector<16x1xf32> to vector<16x128xf32>
    %5 = arith.addf %2, %4 : vector<16x128xf32>
    %c0_5 = arith.constant 0 : index
    %c0_6 = arith.constant 0 : index
    %6 = vector.load %arg4[%c0_5, %c0_6] : memref<16x128xf32, #tpu.memory_space<vmem>>, vector<16x128xf32>
    %7 = arith.addf %5, %6 : vector<16x128xf32>
    %cst_7 = arith.constant 0.000000e+00 : f32
    %8 = vector.broadcast %cst_7 : f32 to vector<16x128xf32>
    %9 = arith.maximumf %7, %8 : vector<16x128xf32>
    %c0_8 = arith.constant 0 : index
    %c0_9 = arith.constant 0 : index
    %10 = vector.load %arg5[%c0_8, %c0_9] : memref<16x128xf32, #tpu.memory_space<vmem>>, vector<16x128xf32>
    tpu.vector_store %arg5[%c0_8, %c0_9], %9 {strides = array<i32>} : memref<16x128xf32, #tpu.memory_space<vmem>>, vector<16x128xf32>,
    return
  }
  func.func @transform_0(%arg0: i32) -> (i32, i32) {
    %c0_i32 = arith.constant 0 : i32
    %c0_i32_0 = arith.constant 0 : i32
    %c0_i32_1 = arith.constant 0 : i32
    return %c0_i32, %c0_i32_0 : i32, i32
  }
  func.func @transform_1(%arg0: i32) -> (i32, i32) {
    %c0_i32 = arith.constant 0 : i32
    %c0_i32_0 = arith.constant 0 : i32
    return %c0_i32, %arg0 : i32, i32
  }
  func.func @transform_2(%arg0: i32) -> (i32, i32) {
    %c0_i32 = arith.constant 0 : i32
    %c0_i32_0 = arith.constant 0 : i32
    %c0_i32_1 = arith.constant 0 : i32
    return %c0_i32, %c0_i32_0 : i32, i32
  }
  func.func @transform_3(%arg0: i32) -> (i32, i32) {
    %c0_i32 = arith.constant 0 : i32
    %c0_i32_0 = arith.constant 0 : i32
    return %c0_i32, %arg0 : i32, i32
  }
  func.func @transform_4(%arg0: i32) -> (i32, i32) {
    %c0_i32 = arith.constant 0 : i32
    %c0_i32_0 = arith.constant 0 : i32
    return %c0_i32, %arg0 : i32, i32
  }
}

module attributes {stable_mosaic.version = 11 : i64} {
  func.func @_convmm_kernel(%arg0: i32, %arg1: memref<8x16xbf16, #tpu.memory_space<vmem>>, %arg2: memref<16x128xbf16, #tpu.memory_space<vmem>>, %arg3: memref<8x1xf32, #tpu.memory_space<vmem>>, %arg4: memref<8x128xf32, #tpu.memory_space<vmem>>) attributes {dimension_semantics = [#tpu.dimension_semantics<parallel>], iteration_bounds = array<i64: 1>, scalar_prefetch = 0 : i64, scratch_operands = 0 : i64, tpu.core_type = #tpu.core_type<tc>, window_params = [{pipeline_mode = #tpu.pipeline_mode<synchronous>, transform_indices = @transform_0, window_bounds = array<i64: 8, 16>}, {transform_indices = @transform_1, window_bounds = array<i64: 16, 128>}, {pipeline_mode = #tpu.pipeline_mode<synchronous>, transform_indices = @transform_2, window_bounds = array<i64: 8, 1>}, {transform_indices = @transform_3, window_bounds = array<i64: 8, 128>}]} {
    %c0 = arith.constant 0 : index
    %c0_0 = arith.constant 0 : index
    %0 = vector.load %arg1[%c0, %c0_0] : memref<8x16xbf16, #tpu.memory_space<vmem>>, vector<8x16xbf16>
    %c0_1 = arith.constant 0 : index
    %c0_2 = arith.constant 0 : index
    %1 = vector.load %arg2[%c0_1, %c0_2] : memref<16x128xbf16, #tpu.memory_space<vmem>>, vector<16x128xbf16>
    %cst = arith.constant dense<0.000000e+00> : vector<8x128xf32>
    %2 = tpu.matmul %0, %1, %cst {dimension_numbers = #tpu.dot_dimension_numbers<[1], [0], [0], [1], [0, 0, 1, 1], [], []>} : vector<8x16xbf16>, vector<16x128xbf16>, vector<8x128xf32> -> vector<8x128xf32>
    %c0_3 = arith.constant 0 : index
    %c0_4 = arith.constant 0 : index
    %3 = vector.load %arg3[%c0_3, %c0_4] : memref<8x1xf32, #tpu.memory_space<vmem>>, vector<8x1xf32>
    %4 = vector.broadcast %3 : vector<8x1xf32> to vector<8x128xf32>
    %5 = arith.addf %2, %4 : vector<8x128xf32>
    %cst_5 = arith.constant 0.000000e+00 : f32
    %6 = vector.broadcast %cst_5 : f32 to vector<8x128xf32>
    %7 = arith.maximumf %5, %6 : vector<8x128xf32>
    %c0_6 = arith.constant 0 : index
    %c0_7 = arith.constant 0 : index
    %8 = vector.load %arg4[%c0_6, %c0_7] : memref<8x128xf32, #tpu.memory_space<vmem>>, vector<8x128xf32>
    tpu.vector_store %arg4[%c0_6, %c0_7], %7 {strides = array<i32>} : memref<8x128xf32, #tpu.memory_space<vmem>>, vector<8x128xf32>,
    return
  }
  func.func @transform_0(%arg0: i32) -> (i32, i32) {
    %c0_i32 = arith.constant 0 : i32
    %c0_i32_0 = arith.constant 0 : i32
    %c0_i32_1 = arith.constant 0 : i32
    return %c0_i32, %c0_i32_0 : i32, i32
  }
  func.func @transform_1(%arg0: i32) -> (i32, i32) {
    %c0_i32 = arith.constant 0 : i32
    %c0_i32_0 = arith.constant 0 : i32
    return %c0_i32, %arg0 : i32, i32
  }
  func.func @transform_2(%arg0: i32) -> (i32, i32) {
    %c0_i32 = arith.constant 0 : i32
    %c0_i32_0 = arith.constant 0 : i32
    %c0_i32_1 = arith.constant 0 : i32
    return %c0_i32, %c0_i32_0 : i32, i32
  }
  func.func @transform_3(%arg0: i32) -> (i32, i32) {
    %c0_i32 = arith.constant 0 : i32
    %c0_i32_0 = arith.constant 0 : i32
    return %c0_i32, %arg0 : i32, i32
  }
}

module attributes {stable_mosaic.version = 11 : i64} {
  func.func @_convmm_kernel(%arg0: i32, %arg1: memref<16x16xbf16, #tpu.memory_space<vmem>>, %arg2: memref<16x128xbf16, #tpu.memory_space<vmem>>, %arg3: memref<16x1xf32, #tpu.memory_space<vmem>>, %arg4: memref<16x128xf32, #tpu.memory_space<vmem>>) attributes {dimension_semantics = [#tpu.dimension_semantics<parallel>], iteration_bounds = array<i64: 1>, scalar_prefetch = 0 : i64, scratch_operands = 0 : i64, tpu.core_type = #tpu.core_type<tc>, window_params = [{pipeline_mode = #tpu.pipeline_mode<synchronous>, transform_indices = @transform_0, window_bounds = array<i64: 16, 16>}, {transform_indices = @transform_1, window_bounds = array<i64: 16, 128>}, {pipeline_mode = #tpu.pipeline_mode<synchronous>, transform_indices = @transform_2, window_bounds = array<i64: 16, 1>}, {transform_indices = @transform_3, window_bounds = array<i64: 16, 128>}]} {
    %c0 = arith.constant 0 : index
    %c0_0 = arith.constant 0 : index
    %0 = vector.load %arg1[%c0, %c0_0] : memref<16x16xbf16, #tpu.memory_space<vmem>>, vector<16x16xbf16>
    %c0_1 = arith.constant 0 : index
    %c0_2 = arith.constant 0 : index
    %1 = vector.load %arg2[%c0_1, %c0_2] : memref<16x128xbf16, #tpu.memory_space<vmem>>, vector<16x128xbf16>
    %cst = arith.constant dense<0.000000e+00> : vector<16x128xf32>
    %2 = tpu.matmul %0, %1, %cst {dimension_numbers = #tpu.dot_dimension_numbers<[1], [0], [0], [1], [0, 0, 1, 1], [], []>} : vector<16x16xbf16>, vector<16x128xbf16>, vector<16x128xf32> -> vector<16x128xf32>
    %c0_3 = arith.constant 0 : index
    %c0_4 = arith.constant 0 : index
    %3 = vector.load %arg3[%c0_3, %c0_4] : memref<16x1xf32, #tpu.memory_space<vmem>>, vector<16x1xf32>
    %4 = vector.broadcast %3 : vector<16x1xf32> to vector<16x128xf32>
    %5 = arith.addf %2, %4 : vector<16x128xf32>
    %c0_5 = arith.constant 0 : index
    %c0_6 = arith.constant 0 : index
    %6 = vector.load %arg4[%c0_5, %c0_6] : memref<16x128xf32, #tpu.memory_space<vmem>>, vector<16x128xf32>
    tpu.vector_store %arg4[%c0_5, %c0_6], %5 {strides = array<i32>} : memref<16x128xf32, #tpu.memory_space<vmem>>, vector<16x128xf32>,
    return
  }
  func.func @transform_0(%arg0: i32) -> (i32, i32) {
    %c0_i32 = arith.constant 0 : i32
    %c0_i32_0 = arith.constant 0 : i32
    %c0_i32_1 = arith.constant 0 : i32
    return %c0_i32, %c0_i32_0 : i32, i32
  }
  func.func @transform_1(%arg0: i32) -> (i32, i32) {
    %c0_i32 = arith.constant 0 : i32
    %c0_i32_0 = arith.constant 0 : i32
    return %c0_i32, %arg0 : i32, i32
  }
  func.func @transform_2(%arg0: i32) -> (i32, i32) {
    %c0_i32 = arith.constant 0 : i32
    %c0_i32_0 = arith.constant 0 : i32
    %c0_i32_1 = arith.constant 0 : i32
    return %c0_i32, %c0_i32_0 : i32, i32
  }
  func.func @transform_3(%arg0: i32) -> (i32, i32) {
    %c0_i32 = arith.constant 0 : i32
    %c0_i32_0 = arith.constant 0 : i32
    return %c0_i32, %arg0 : i32, i32
  }
}

module attributes {stable_mosaic.version = 11 : i64} {
  func.func @_convmm_kernel(%arg0: i32, %arg1: memref<16x8xbf16, #tpu.memory_space<vmem>>, %arg2: memref<8x128xbf16, #tpu.memory_space<vmem>>, %arg3: memref<16x1xf32, #tpu.memory_space<vmem>>, %arg4: memref<16x128xf32, #tpu.memory_space<vmem>>, %arg5: memref<16x128xf32, #tpu.memory_space<vmem>>) attributes {dimension_semantics = [#tpu.dimension_semantics<parallel>], iteration_bounds = array<i64: 1>, scalar_prefetch = 0 : i64, scratch_operands = 0 : i64, tpu.core_type = #tpu.core_type<tc>, window_params = [{pipeline_mode = #tpu.pipeline_mode<synchronous>, transform_indices = @transform_0, window_bounds = array<i64: 16, 8>}, {transform_indices = @transform_1, window_bounds = array<i64: 8, 128>}, {pipeline_mode = #tpu.pipeline_mode<synchronous>, transform_indices = @transform_2, window_bounds = array<i64: 16, 1>}, {transform_indices = @transform_3, window_bounds = array<i64: 16, 128>}, {transform_indices = @transform_4, window_bounds = array<i64: 16, 128>}]} {
    %c0 = arith.constant 0 : index
    %c0_0 = arith.constant 0 : index
    %0 = vector.load %arg1[%c0, %c0_0] : memref<16x8xbf16, #tpu.memory_space<vmem>>, vector<16x8xbf16>
    %c0_1 = arith.constant 0 : index
    %c0_2 = arith.constant 0 : index
    %1 = vector.load %arg2[%c0_1, %c0_2] : memref<8x128xbf16, #tpu.memory_space<vmem>>, vector<8x128xbf16>
    %cst = arith.constant dense<0.000000e+00> : vector<16x128xf32>
    %2 = tpu.matmul %0, %1, %cst {dimension_numbers = #tpu.dot_dimension_numbers<[1], [0], [0], [1], [0, 0, 1, 1], [], []>} : vector<16x8xbf16>, vector<8x128xbf16>, vector<16x128xf32> -> vector<16x128xf32>
    %c0_3 = arith.constant 0 : index
    %c0_4 = arith.constant 0 : index
    %3 = vector.load %arg3[%c0_3, %c0_4] : memref<16x1xf32, #tpu.memory_space<vmem>>, vector<16x1xf32>
    %4 = vector.broadcast %3 : vector<16x1xf32> to vector<16x128xf32>
    %5 = arith.addf %2, %4 : vector<16x128xf32>
    %c0_5 = arith.constant 0 : index
    %c0_6 = arith.constant 0 : index
    %6 = vector.load %arg4[%c0_5, %c0_6] : memref<16x128xf32, #tpu.memory_space<vmem>>, vector<16x128xf32>
    %7 = arith.addf %5, %6 : vector<16x128xf32>
    %cst_7 = arith.constant 0.000000e+00 : f32
    %8 = vector.broadcast %cst_7 : f32 to vector<16x128xf32>
    %9 = arith.maximumf %7, %8 : vector<16x128xf32>
    %c0_8 = arith.constant 0 : index
    %c0_9 = arith.constant 0 : index
    %10 = vector.load %arg5[%c0_8, %c0_9] : memref<16x128xf32, #tpu.memory_space<vmem>>, vector<16x128xf32>
    tpu.vector_store %arg5[%c0_8, %c0_9], %9 {strides = array<i32>} : memref<16x128xf32, #tpu.memory_space<vmem>>, vector<16x128xf32>,
    return
  }
  func.func @transform_0(%arg0: i32) -> (i32, i32) {
    %c0_i32 = arith.constant 0 : i32
    %c0_i32_0 = arith.constant 0 : i32
    %c0_i32_1 = arith.constant 0 : i32
    return %c0_i32, %c0_i32_0 : i32, i32
  }
  func.func @transform_1(%arg0: i32) -> (i32, i32) {
    %c0_i32 = arith.constant 0 : i32
    %c0_i32_0 = arith.constant 0 : i32
    return %c0_i32, %arg0 : i32, i32
  }
  func.func @transform_2(%arg0: i32) -> (i32, i32) {
    %c0_i32 = arith.constant 0 : i32
    %c0_i32_0 = arith.constant 0 : i32
    %c0_i32_1 = arith.constant 0 : i32
    return %c0_i32, %c0_i32_0 : i32, i32
  }
  func.func @transform_3(%arg0: i32) -> (i32, i32) {
    %c0_i32 = arith.constant 0 : i32
    %c0_i32_0 = arith.constant 0 : i32
    return %c0_i32, %arg0 : i32, i32
  }
  func.func @transform_4(%arg0: i32) -> (i32, i32) {
    %c0_i32 = arith.constant 0 : i32
    %c0_i32_0 = arith.constant 0 : i32
    return %c0_i32, %arg0 : i32, i32
  }
}

module attributes {stable_mosaic.version = 11 : i64} {
  func.func @_convmm_kernel(%arg0: i32, %arg1: memref<8x72xbf16, #tpu.memory_space<vmem>>, %arg2: memref<72x128xbf16, #tpu.memory_space<vmem>>, %arg3: memref<8x1xf32, #tpu.memory_space<vmem>>, %arg4: memref<8x128xf32, #tpu.memory_space<vmem>>) attributes {dimension_semantics = [#tpu.dimension_semantics<parallel>], iteration_bounds = array<i64: 1>, scalar_prefetch = 0 : i64, scratch_operands = 0 : i64, tpu.core_type = #tpu.core_type<tc>, window_params = [{pipeline_mode = #tpu.pipeline_mode<synchronous>, transform_indices = @transform_0, window_bounds = array<i64: 8, 72>}, {transform_indices = @transform_1, window_bounds = array<i64: 72, 128>}, {pipeline_mode = #tpu.pipeline_mode<synchronous>, transform_indices = @transform_2, window_bounds = array<i64: 8, 1>}, {transform_indices = @transform_3, window_bounds = array<i64: 8, 128>}]} {
    %c0 = arith.constant 0 : index
    %c0_0 = arith.constant 0 : index
    %0 = vector.load %arg1[%c0, %c0_0] : memref<8x72xbf16, #tpu.memory_space<vmem>>, vector<8x72xbf16>
    %c0_1 = arith.constant 0 : index
    %c0_2 = arith.constant 0 : index
    %1 = vector.load %arg2[%c0_1, %c0_2] : memref<72x128xbf16, #tpu.memory_space<vmem>>, vector<72x128xbf16>
    %cst = arith.constant dense<0.000000e+00> : vector<8x128xf32>
    %2 = tpu.matmul %0, %1, %cst {dimension_numbers = #tpu.dot_dimension_numbers<[1], [0], [0], [1], [0, 0, 1, 1], [], []>} : vector<8x72xbf16>, vector<72x128xbf16>, vector<8x128xf32> -> vector<8x128xf32>
    %c0_3 = arith.constant 0 : index
    %c0_4 = arith.constant 0 : index
    %3 = vector.load %arg3[%c0_3, %c0_4] : memref<8x1xf32, #tpu.memory_space<vmem>>, vector<8x1xf32>
    %4 = vector.broadcast %3 : vector<8x1xf32> to vector<8x128xf32>
    %5 = arith.addf %2, %4 : vector<8x128xf32>
    %cst_5 = arith.constant 0.000000e+00 : f32
    %6 = vector.broadcast %cst_5 : f32 to vector<8x128xf32>
    %7 = arith.maximumf %5, %6 : vector<8x128xf32>
    %c0_6 = arith.constant 0 : index
    %c0_7 = arith.constant 0 : index
    %8 = vector.load %arg4[%c0_6, %c0_7] : memref<8x128xf32, #tpu.memory_space<vmem>>, vector<8x128xf32>
    tpu.vector_store %arg4[%c0_6, %c0_7], %7 {strides = array<i32>} : memref<8x128xf32, #tpu.memory_space<vmem>>, vector<8x128xf32>,
    return
  }
  func.func @transform_0(%arg0: i32) -> (i32, i32) {
    %c0_i32 = arith.constant 0 : i32
    %c0_i32_0 = arith.constant 0 : i32
    %c0_i32_1 = arith.constant 0 : i32
    return %c0_i32, %c0_i32_0 : i32, i32
  }
  func.func @transform_1(%arg0: i32) -> (i32, i32) {
    %c0_i32 = arith.constant 0 : i32
    %c0_i32_0 = arith.constant 0 : i32
    return %c0_i32, %arg0 : i32, i32
  }
  func.func @transform_2(%arg0: i32) -> (i32, i32) {
    %c0_i32 = arith.constant 0 : i32
    %c0_i32_0 = arith.constant 0 : i32
    %c0_i32_1 = arith.constant 0 : i32
    return %c0_i32, %c0_i32_0 : i32, i32
  }
  func.func @transform_3(%arg0: i32) -> (i32, i32) {
    %c0_i32 = arith.constant 0 : i32
    %c0_i32_0 = arith.constant 0 : i32
    return %c0_i32, %arg0 : i32, i32
  }
}

module attributes {stable_mosaic.version = 11 : i64} {
  func.func @_pool_linear_kernel(%arg0: i32, %arg1: memref<2x16x16xf32, #tpu.memory_space<vmem>>, %arg2: memref<16x10xf32, #tpu.memory_space<vmem>>, %arg3: memref<1x10xf32, #tpu.memory_space<vmem>>, %arg4: memref<2x10xf32, #tpu.memory_space<vmem>>) attributes {dimension_semantics = [#tpu.dimension_semantics<arbitrary>], iteration_bounds = array<i64: 1>, scalar_prefetch = 0 : i64, scratch_operands = 0 : i64, tpu.core_type = #tpu.core_type<tc>, window_params = [{pipeline_mode = #tpu.pipeline_mode<synchronous>, transform_indices = @transform_0, window_bounds = array<i64: 2, 16, 16>}, {pipeline_mode = #tpu.pipeline_mode<synchronous>, transform_indices = @transform_1, window_bounds = array<i64: 16, 10>}, {pipeline_mode = #tpu.pipeline_mode<synchronous>, transform_indices = @transform_2, window_bounds = array<i64: 1, 10>}, {pipeline_mode = #tpu.pipeline_mode<synchronous>, transform_indices = @transform_3, window_bounds = array<i64: 2, 10>}]} {
    %c0 = arith.constant 0 : index
    %c0_0 = arith.constant 0 : index
    %c0_1 = arith.constant 0 : index
    %0 = vector.load %arg1[%c0, %c0_0, %c0_1] : memref<2x16x16xf32, #tpu.memory_space<vmem>>, vector<2x16x16xf32>
    %cst = arith.constant dense<0.000000e+00> : vector<2x16xf32>
    %1 = vector.multi_reduction <add>, %0, %cst [1] : vector<2x16x16xf32> to vector<2x16xf32>
    %cst_2 = arith.constant 1.600000e+01 : f32
    %2 = vector.broadcast %cst_2 : f32 to vector<2x16xf32>
    %3 = arith.divf %1, %2 : vector<2x16xf32>
    %c0_3 = arith.constant 0 : index
    %c0_4 = arith.constant 0 : index
    %4 = vector.load %arg2[%c0_3, %c0_4] : memref<16x10xf32, #tpu.memory_space<vmem>>, vector<16x10xf32>
    %cst_5 = arith.constant dense<0.000000e+00> : vector<2x10xf32>
    %5 = tpu.matmul %3, %4, %cst_5 {dimension_numbers = #tpu.dot_dimension_numbers<[1], [0], [0], [1], [0, 0, 1, 1], [], []>} : vector<2x16xf32>, vector<16x10xf32>, vector<2x10xf32> -> vector<2x10xf32>
    %c0_6 = arith.constant 0 : index
    %c0_7 = arith.constant 0 : index
    %6 = vector.load %arg3[%c0_6, %c0_7] : memref<1x10xf32, #tpu.memory_space<vmem>>, vector<1x10xf32>
    %7 = vector.broadcast %6 : vector<1x10xf32> to vector<2x10xf32>
    %8 = arith.addf %5, %7 : vector<2x10xf32>
    %c0_8 = arith.constant 0 : index
    %c0_9 = arith.constant 0 : index
    %9 = vector.load %arg4[%c0_8, %c0_9] : memref<2x10xf32, #tpu.memory_space<vmem>>, vector<2x10xf32>
    tpu.vector_store %arg4[%c0_8, %c0_9], %8 {strides = array<i32>} : memref<2x10xf32, #tpu.memory_space<vmem>>, vector<2x10xf32>,
    return
  }
  func.func @transform_0(%arg0: i32) -> (i32, i32, i32) {
    %c0_i32 = arith.constant 0 : i32
    %c0_i32_0 = arith.constant 0 : i32
    %c0_i32_1 = arith.constant 0 : i32
    %c0_i32_2 = arith.constant 0 : i32
    return %c0_i32, %c0_i32_0, %c0_i32_1 : i32, i32, i32
  }
  func.func @transform_1(%arg0: i32) -> (i32, i32) {
    %c0_i32 = arith.constant 0 : i32
    %c0_i32_0 = arith.constant 0 : i32
    %c0_i32_1 = arith.constant 0 : i32
    return %c0_i32, %c0_i32_0 : i32, i32
  }
  func.func @transform_2(%arg0: i32) -> (i32, i32) {
    %c0_i32 = arith.constant 0 : i32
    %c0_i32_0 = arith.constant 0 : i32
    %c0_i32_1 = arith.constant 0 : i32
    return %c0_i32, %c0_i32_0 : i32, i32
  }
  func.func @transform_3(%arg0: i32) -> (i32, i32) {
    %c0_i32 = arith.constant 0 : i32
    %c0_i32_0 = arith.constant 0 : i32
    %c0_i32_1 = arith.constant 0 : i32
    return %c0_i32, %c0_i32_0 : i32, i32
  }
}

module attributes {stable_mosaic.version = 11 : i64} {
  func.func @_pool_linear_kernel(%arg0: i32, %arg1: memref<2x64x16xf32, #tpu.memory_space<vmem>>, %arg2: memref<16x10xf32, #tpu.memory_space<vmem>>, %arg3: memref<1x10xf32, #tpu.memory_space<vmem>>, %arg4: memref<2x10xf32, #tpu.memory_space<vmem>>) attributes {dimension_semantics = [#tpu.dimension_semantics<arbitrary>], iteration_bounds = array<i64: 1>, scalar_prefetch = 0 : i64, scratch_operands = 0 : i64, tpu.core_type = #tpu.core_type<tc>, window_params = [{pipeline_mode = #tpu.pipeline_mode<synchronous>, transform_indices = @transform_0, window_bounds = array<i64: 2, 64, 16>}, {pipeline_mode = #tpu.pipeline_mode<synchronous>, transform_indices = @transform_1, window_bounds = array<i64: 16, 10>}, {pipeline_mode = #tpu.pipeline_mode<synchronous>, transform_indices = @transform_2, window_bounds = array<i64: 1, 10>}, {pipeline_mode = #tpu.pipeline_mode<synchronous>, transform_indices = @transform_3, window_bounds = array<i64: 2, 10>}]} {
    %c0 = arith.constant 0 : index
    %c0_0 = arith.constant 0 : index
    %c0_1 = arith.constant 0 : index
    %0 = vector.load %arg1[%c0, %c0_0, %c0_1] : memref<2x64x16xf32, #tpu.memory_space<vmem>>, vector<2x64x16xf32>
    %cst = arith.constant dense<0.000000e+00> : vector<2x16xf32>
    %1 = vector.multi_reduction <add>, %0, %cst [1] : vector<2x64x16xf32> to vector<2x16xf32>
    %cst_2 = arith.constant 6.400000e+01 : f32
    %2 = vector.broadcast %cst_2 : f32 to vector<2x16xf32>
    %3 = arith.divf %1, %2 : vector<2x16xf32>
    %c0_3 = arith.constant 0 : index
    %c0_4 = arith.constant 0 : index
    %4 = vector.load %arg2[%c0_3, %c0_4] : memref<16x10xf32, #tpu.memory_space<vmem>>, vector<16x10xf32>
    %cst_5 = arith.constant dense<0.000000e+00> : vector<2x10xf32>
    %5 = tpu.matmul %3, %4, %cst_5 {dimension_numbers = #tpu.dot_dimension_numbers<[1], [0], [0], [1], [0, 0, 1, 1], [], []>} : vector<2x16xf32>, vector<16x10xf32>, vector<2x10xf32> -> vector<2x10xf32>
    %c0_6 = arith.constant 0 : index
    %c0_7 = arith.constant 0 : index
    %6 = vector.load %arg3[%c0_6, %c0_7] : memref<1x10xf32, #tpu.memory_space<vmem>>, vector<1x10xf32>
    %7 = vector.broadcast %6 : vector<1x10xf32> to vector<2x10xf32>
    %8 = arith.addf %5, %7 : vector<2x10xf32>
    %c0_8 = arith.constant 0 : index
    %c0_9 = arith.constant 0 : index
    %9 = vector.load %arg4[%c0_8, %c0_9] : memref<2x10xf32, #tpu.memory_space<vmem>>, vector<2x10xf32>
    tpu.vector_store %arg4[%c0_8, %c0_9], %8 {strides = array<i32>} : memref<2x10xf32, #tpu.memory_space<vmem>>, vector<2x10xf32>,
    return
  }
  func.func @transform_0(%arg0: i32) -> (i32, i32, i32) {
    %c0_i32 = arith.constant 0 : i32
    %c0_i32_0 = arith.constant 0 : i32
    %c0_i32_1 = arith.constant 0 : i32
    %c0_i32_2 = arith.constant 0 : i32
    return %c0_i32, %c0_i32_0, %c0_i32_1 : i32, i32, i32
  }
  func.func @transform_1(%arg0: i32) -> (i32, i32) {
    %c0_i32 = arith.constant 0 : i32
    %c0_i32_0 = arith.constant 0 : i32
    %c0_i32_1 = arith.constant 0 : i32
    return %c0_i32, %c0_i32_0 : i32, i32
  }
  func.func @transform_2(%arg0: i32) -> (i32, i32) {
    %c0_i32 = arith.constant 0 : i32
    %c0_i32_0 = arith.constant 0 : i32
    %c0_i32_1 = arith.constant 0 : i32
    return %c0_i32, %c0_i32_0 : i32, i32
  }
  func.func @transform_3(%arg0: i32) -> (i32, i32) {
    %c0_i32 = arith.constant 0 : i32
    %c0_i32_0 = arith.constant 0 : i32
    %c0_i32_1 = arith.constant 0 : i32
    return %c0_i32, %c0_i32_0 : i32, i32
  }
}

module attributes {stable_mosaic.version = 11 : i64} {
  func.func @_pool_linear_kernel(%arg0: i32, %arg1: memref<2x256x8xf32, #tpu.memory_space<vmem>>, %arg2: memref<8x10xf32, #tpu.memory_space<vmem>>, %arg3: memref<1x10xf32, #tpu.memory_space<vmem>>, %arg4: memref<2x10xf32, #tpu.memory_space<vmem>>) attributes {dimension_semantics = [#tpu.dimension_semantics<arbitrary>], iteration_bounds = array<i64: 1>, scalar_prefetch = 0 : i64, scratch_operands = 0 : i64, tpu.core_type = #tpu.core_type<tc>, window_params = [{pipeline_mode = #tpu.pipeline_mode<synchronous>, transform_indices = @transform_0, window_bounds = array<i64: 2, 256, 8>}, {pipeline_mode = #tpu.pipeline_mode<synchronous>, transform_indices = @transform_1, window_bounds = array<i64: 8, 10>}, {pipeline_mode = #tpu.pipeline_mode<synchronous>, transform_indices = @transform_2, window_bounds = array<i64: 1, 10>}, {pipeline_mode = #tpu.pipeline_mode<synchronous>, transform_indices = @transform_3, window_bounds = array<i64: 2, 10>}]} {
    %c0 = arith.constant 0 : index
    %c0_0 = arith.constant 0 : index
    %c0_1 = arith.constant 0 : index
    %0 = vector.load %arg1[%c0, %c0_0, %c0_1] : memref<2x256x8xf32, #tpu.memory_space<vmem>>, vector<2x256x8xf32>
    %cst = arith.constant dense<0.000000e+00> : vector<2x8xf32>
    %1 = vector.multi_reduction <add>, %0, %cst [1] : vector<2x256x8xf32> to vector<2x8xf32>
    %cst_2 = arith.constant 2.560000e+02 : f32
    %2 = vector.broadcast %cst_2 : f32 to vector<2x8xf32>
    %3 = arith.divf %1, %2 : vector<2x8xf32>
    %c0_3 = arith.constant 0 : index
    %c0_4 = arith.constant 0 : index
    %4 = vector.load %arg2[%c0_3, %c0_4] : memref<8x10xf32, #tpu.memory_space<vmem>>, vector<8x10xf32>
    %cst_5 = arith.constant dense<0.000000e+00> : vector<2x10xf32>
    %5 = tpu.matmul %3, %4, %cst_5 {dimension_numbers = #tpu.dot_dimension_numbers<[1], [0], [0], [1], [0, 0, 1, 1], [], []>} : vector<2x8xf32>, vector<8x10xf32>, vector<2x10xf32> -> vector<2x10xf32>
    %c0_6 = arith.constant 0 : index
    %c0_7 = arith.constant 0 : index
    %6 = vector.load %arg3[%c0_6, %c0_7] : memref<1x10xf32, #tpu.memory_space<vmem>>, vector<1x10xf32>
    %7 = vector.broadcast %6 : vector<1x10xf32> to vector<2x10xf32>
    %8 = arith.addf %5, %7 : vector<2x10xf32>
    %c0_8 = arith.constant 0 : index
    %c0_9 = arith.constant 0 : index
    %9 = vector.load %arg4[%c0_8, %c0_9] : memref<2x10xf32, #tpu.memory_space<vmem>>, vector<2x10xf32>
    tpu.vector_store %arg4[%c0_8, %c0_9], %8 {strides = array<i32>} : memref<2x10xf32, #tpu.memory_space<vmem>>, vector<2x10xf32>,
    return
  }
  func.func @transform_0(%arg0: i32) -> (i32, i32, i32) {
    %c0_i32 = arith.constant 0 : i32
    %c0_i32_0 = arith.constant 0 : i32
    %c0_i32_1 = arith.constant 0 : i32
    %c0_i32_2 = arith.constant 0 : i32
    return %c0_i32, %c0_i32_0, %c0_i32_1 : i32, i32, i32
  }
  func.func @transform_1(%arg0: i32) -> (i32, i32) {
    %c0_i32 = arith.constant 0 : i32
    %c0_i32_0 = arith.constant 0 : i32
    %c0_i32_1 = arith.constant 0 : i32
    return %c0_i32, %c0_i32_0 : i32, i32
  }
  func.func @transform_2(%arg0: i32) -> (i32, i32) {
    %c0_i32 = arith.constant 0 : i32
    %c0_i32_0 = arith.constant 0 : i32
    %c0_i32_1 = arith.constant 0 : i32
    return %c0_i32, %c0_i32_0 : i32, i32
  }
  func.func @transform_3(%arg0: i32) -> (i32, i32) {
    %c0_i32 = arith.constant 0 : i32
    %c0_i32_0 = arith.constant 0 : i32
    %c0_i32_1 = arith.constant 0 : i32
    return %c0_i32, %c0_i32_0 : i32, i32
  }
}

</mosaic_0001>

<llo_original>
// kernel: _lambda_.11
$region0: #{_lambda_.11}
  #allocation0 [shape = 'u32[]', space=smem, size = 0x4, offset = 0x4, fixed_abs, tag = 'smem constant byte address 0x4 - core index']
  #allocation1 [shape = 'u32[144,128]{1,0:T(1,128)}', space=vmem, size = 0x12000, scoped, tag = 'internal scratch']
  %s0 = inlined_call_operand.vmem [shape: bf16[8,36], index: 0, kind: input, shape index: {}]
  %s1 = inlined_call_operand.vmem [shape: bf16[36,512], index: 1, kind: input, shape index: {}]
  %s2 = inlined_call_operand.vmem [shape: f32[8,1], index: 2, kind: input, shape index: {}]
  %s3 = inlined_call_operand.vmem [shape: f32[8,512], index: 3, kind: output, shape index: {}]
  %s4 = sld [smem:[#allocation0]]
  $region83: #{_lambda_.11} parent=0
    _
  %s6 = ssub.s32 1, %s4
  %s7 = scalar_select 0, %s6, %s4
  $region1: #{_lambda_.11} parent=0
    #allocation2 [shape = 'u8[40960]{0}', space=vmem, size = 0xa000, scoped, tag = 'input window, operand 1']
    loop: start=0, step=1, limit=4
    $region2: #{_lambda_.11} parent=1 // loop_pre_header
      _
    $region3: #{_lambda_.11} parent=1 // loop_header
      %s9 = sphi 0, %s13
      %p10 = scmp.ge.s32.totalorder %s9, 4
      %s17 = sphi 0, %s17
      %s19 = sphi 0, %s17
      %s20 = sphi 0, %s19
      %s34 = sphi 0, %s20
      %s40 = sphi 0, %s42
      %s43 = sphi 0, %s40
      %s44 = sphi 0, %s43
      %s60 = sphi 0, %s44
      %s64 = sphi 0, %s64
      %s66 = sphi 0, %s64
      %s67 = sphi 0, %s66
      %s81 = sphi 0, %s67
      %s87 = sphi 0, %s89
      %s90 = sphi 0, %s87
      %s91 = sphi 0, %s90
      %s107 = sphi 0, %s91
    $region4: #{_lambda_.11} parent=1 // loop_header_branch
      %12 = sbr.rel (%p10) target = $region8
    $region5: #{_lambda_.11} parent=1 // loop_body
      %s14 = ssub.s32 %s9, 1
      %s15 = ssub.s32 %s9, 2
      %s16 = sadd.s32 %s9, 1
      %s18 = sadd.s32 %s17, 1
      %p21 = scmp.eq.s32.totalorder %s9, 1
      %p22 = scmp.ne.s32.totalorder %s17, %s19
      %p23 = scmp.eq.s32.totalorder %s9, 0
      %p24 = por %p22, %p23
      %p25 = scmp.ne.s32.totalorder %s17, %s19
      %p26 = scmp.eq.s32.totalorder %s14, 1
      %p27 = por %p25, %p26
      %p28 = scmp.ne.s32.totalorder %s19, %s20
      %p29 = scmp.eq.s32.totalorder %s14, 0
      %p30 = por %p28, %p29
      %p31 = scmp.ne.s32.totalorder %s19, %s20
      %p32 = scmp.eq.s32.totalorder %s15, 1
      %p33 = por %p31, %p32
      %p35 = scmp.ne.s32.totalorder %s20, %s34
      %p36 = scmp.eq.s32.totalorder %s15, 0
      %p37 = por %p35, %p36
      %s38 = ssub.s32 %s9, %s16
      %p39 = scmp.eq.s32.totalorder %s38, 0
      %s41 = sadd.s32 %s40, 1
      %s42 = scalar_select %p39, %s40, %s41
      %p45 = pneg %p39
      %p46 = scmp.eq.s32.totalorder %s9, 1
      %p47 = por %p45, %p46
      %p48 = scmp.ne.s32.totalorder %s40, %s43
      %p49 = scmp.eq.s32.totalorder %s9, 0
      %p50 = por %p48, %p49
      %p51 = scmp.ne.s32.totalorder %s40, %s43
      %p52 = scmp.eq.s32.totalorder %s14, 1
      %p53 = por %p51, %p52
      %p54 = scmp.ne.s32.totalorder %s43, %s44
      %p55 = scmp.eq.s32.totalorder %s14, 0
      %p56 = por %p54, %p55
      %p57 = scmp.ne.s32.totalorder %s43, %s44
      %p58 = scmp.eq.s32.totalorder %s15, 1
      %p59 = por %p57, %p58
      %p61 = scmp.ne.s32.totalorder %s44, %s60
      %p62 = scmp.eq.s32.totalorder %s15, 0
      %p63 = por %p61, %p62
      %s65 = sadd.s32 %s64, 1
      %p68 = scmp.eq.s32.totalorder %s9, 1
      %p69 = scmp.ne.s32.totalorder %s64, %s66
      %p70 = scmp.eq.s32.totalorder %s9, 0
      %p71 = por %p69, %p70
      %p72 = scmp.ne.s32.totalorder %s64, %s66
      %p73 = scmp.eq.s32.totalorder %s14, 1
      %p74 = por %p72, %p73
      %p75 = scmp.ne.s32.totalorder %s66, %s67
      %p76 = scmp.eq.s32.totalorder %s14, 0
      %p77 = por %p75, %p76
      %p78 = scmp.ne.s32.totalorder %s66, %s67
      %p79 = scmp.eq.s32.totalorder %s15, 1
      %p80 = por %p78, %p79
      %p82 = scmp.ne.s32.totalorder %s67, %s81
      %p83 = scmp.eq.s32.totalorder %s15, 0
      %p84 = por %p82, %p83
      %s85 = ssub.s32 %s9, %s16
      %p86 = scmp.eq.s32.totalorder %s85, 0
      %s88 = sadd.s32 %s87, 1
      %s89 = scalar_select %p86, %s87, %s88
      %p92 = pneg %p86
      %p93 = scmp.eq.s32.totalorder %s9, 1
      %p94 = por %p92, %p93
      %p95 = scmp.ne.s32.totalorder %s87, %s90
      %p96 = scmp.eq.s32.totalorder %s9, 0
      %p97 = por %p95, %p96
      %p98 = scmp.ne.s32.totalorder %s87, %s90
      %p99 = scmp.eq.s32.totalorder %s14, 1
      %p100 = por %p98, %p99
      %p101 = scmp.ne.s32.totalorder %s90, %s91
      %p102 = scmp.eq.s32.totalorder %s14, 0
      %p103 = por %p101, %p102
      %p104 = scmp.ne.s32.totalorder %s90, %s91
      %p105 = scmp.eq.s32.totalorder %s15, 1
      %p106 = por %p104, %p105
      %p108 = scmp.ne.s32.totalorder %s91, %s107
      %p109 = scmp.eq.s32.totalorder %s15, 0
      %p110 = por %p108, %p109
      %p111 = scmp.le.s32.totalorder 1, %s9
      %p112 = scmp.lt.s32.totalorder %s9, 3
      %p113 = pnand %p111, %p112
      %p114 = pneg %p113
      // Predicated region
      $region9: #{_lambda_.11} parent=5 // pred_check
        _
      $region10: #{_lambda_.11} parent=5 // pred_check_branch
        %116 = sbr.rel (%p113) target = $region12
      $region11: #{_lambda_.11} parent=5 // pred_region
        %s117 = ssub.s32 %s9, 1
        // Predicated region
        $region13: #{_lambda_.11} parent=11 // pred_check
          %p118 = pneg %p30
        $region14: #{_lambda_.11} parent=11 // pred_check_branch
          %120 = sbr.rel (%p118) target = $region16
        $region15: #{_lambda_.11} parent=11 // pred_region
          _
        $region16: #{_lambda_.11} parent=11 // pred_fallthru
          _
        // Predicated region
        $region17: #{_lambda_.11} parent=11 // pred_check
          %p121 = pneg %p77
        $region18: #{_lambda_.11} parent=11 // pred_check_branch
          %123 = sbr.rel (%p121) target = $region20
        $region19: #{_lambda_.11} parent=11 // pred_region
          _
        $region20: #{_lambda_.11} parent=11 // pred_fallthru
          _
      $region12: #{_lambda_.11} parent=5 // pred_fallthru
        _
      %p124 = scmp.lt.s32.totalorder %s9, 2
      // Predicated region
      $region21: #{_lambda_.11} parent=5 // pred_check
        %p125 = pneg %p124
      $region22: #{_lambda_.11} parent=5 // pred_check_branch
        %127 = sbr.rel (%p125) target = $region24
      $region23: #{_lambda_.11} parent=5 // pred_region
        // Predicated region
        $region25: #{_lambda_.11} parent=23 // pred_check
          %p128 = pneg %p50
        $region26: #{_lambda_.11} parent=23 // pred_check_branch
          %130 = sbr.rel (%p128) target = $region28
        $region27: #{_lambda_.11} parent=23 // pred_region
          %s131 = sand.u32 %s40, 1
          %s132 = sand.u32 %s40, 1
          %s133 = smul.addr %s132, 40
          %s134 = scalar_lea.vmem [#allocation2], %s133
          %s135 = smul.u32 2, %s9
          %s136 = smul.addr %s135, 4
          %s137 = scalar_lea.vmem %s1, %s136
          // Predicated region
          $region29: #{_lambda_.11} parent=27 // pred_check
            _
          $region30: #{_lambda_.11} parent=27 // pred_check_branch
            %139 = sbr.rel (0) target = $region32
          $region31: #{_lambda_.11} parent=27 // pred_region
            // Predicated region
            $region33: #{_lambda_.11} parent=31 // pred_check
              _
            $region34: #{_lambda_.11} parent=31 // pred_check_branch
              %141 = sbr.rel (0) target = $region36
            $region35: #{_lambda_.11} parent=31 // pred_region
              // Predicated region
              $region48: #{_lambda_.11} parent=35 // pred_check
                _
              $region49: #{_lambda_.11} parent=35 // pred_check_branch
                %165 = sbr.rel (0) target = $region51
              $region50: #{_lambda_.11} parent=35 // pred_region
                loop: start=0, step=1, limit=1
                $region52: #{_lambda_.11} parent=50 // loop_pre_header
                  _
                $region53: #{_lambda_.11} parent=50 // loop_header
                  %s167 = sphi 0, %s171
                  %p168 = scmp.ge.s32.totalorder %s167, 1
                  %s172 = sphi %s137, %s137
                  %s173 = sphi %s134, %s134
                $region54: #{_lambda_.11} parent=50 // loop_header_branch
                  %170 = sbr.rel (%p168) target = $region58
                $region55: #{_lambda_.11} parent=50 // loop_body
                  %v174 = vld [vmem:[%s172] sm:$0xff]
                  %175 = vst [vmem:[%s173] sm:$0xff] %v174
                  %v176 = vld [vmem:[%s172 + $0x10] sm:$0xff]
                  %177 = vst [vmem:[%s173 + $0x8] sm:$0xff] %v176
                  %v178 = vld [vmem:[%s172 + $0x20] sm:$0xff]
                  %179 = vst [vmem:[%s173 + $0x10] sm:$0xff] %v178
                  %v180 = vld [vmem:[%s172 + $0x30] sm:$0xff]
                  %181 = vst [vmem:[%s173 + $0x18] sm:$0xff] %v180
                  %v182 = vld [vmem:[%s172 + $0x40] sm:$0xff]
                  %183 = vst [vmem:[%s173 + $0x20] sm:$0xff] %v182
                $region56: #{_lambda_.11} parent=50 // loop_footer
                  %s171 = sadd.s32 1, %s167
                $region57: #{_lambda_.11} parent=50 // loop_footer_branch
                  %166 = sbr.rel target = $region53
                $region58: #{_lambda_.11} parent=50 // loop_exit
                  _
              $region51: #{_lambda_.11} parent=35 // pred_fallthru
                _
              // Predicated region
              $region59: #{_lambda_.11} parent=35 // pred_check
                _
              $region60: #{_lambda_.11} parent=35 // pred_check_branch
                %185 = sbr.rel target = $region62
              $region61: #{_lambda_.11} parent=35 // pred_region
                _
              $region62: #{_lambda_.11} parent=35 // pred_fallthru
                _
            $region36: #{_lambda_.11} parent=31 // pred_fallthru
              _
            // Predicated region
            $region37: #{_lambda_.11} parent=31 // pred_check
              _
            $region38: #{_lambda_.11} parent=31 // pred_check_branch
              %143 = sbr.rel target = $region40
            $region39: #{_lambda_.11} parent=31 // pred_region
              %s145 = ssub.s32 256, 1
              loop: start=0, step=1, limit=1
              $region41: #{_lambda_.11} parent=39 // loop_pre_header
                _
              $region42: #{_lambda_.11} parent=39 // loop_header
                %s147 = sphi 0, %s151
                %p148 = scmp.ge.s32.totalorder %s147, 1
                %s152 = sphi %s137, %s137
                %s153 = sphi %s134, %s134
              $region43: #{_lambda_.11} parent=39 // loop_header_branch
                %150 = sbr.rel (%p148) target = $region47
              $region44: #{_lambda_.11} parent=39 // loop_body
                %v154 = vld [vmem:[%s152] sm:%s145]
                %155 = vst [vmem:[%s153] sm:%s145] %v154
                %v156 = vld [vmem:[%s152 + $0x10] sm:%s145]
                %157 = vst [vmem:[%s153 + $0x8] sm:%s145] %v156
                %v158 = vld [vmem:[%s152 + $0x20] sm:%s145]
                %159 = vst [vmem:[%s153 + $0x10] sm:%s145] %v158
                %v160 = vld [vmem:[%s152 + $0x30] sm:%s145]
                %161 = vst [vmem:[%s153 + $0x18] sm:%s145] %v160
                %v162 = vld [vmem:[%s152 + $0x40] sm:%s145]
                %163 = vst [vmem:[%s153 + $0x20] sm:%s145] %v162
              $region45: #{_lambda_.11} parent=39 // loop_footer
                %s151 = sadd.s32 1, %s147
              $region46: #{_lambda_.11} parent=39 // loop_footer_branch
                %146 = sbr.rel target = $region42
              $region47: #{_lambda_.11} parent=39 // loop_exit
                _
            $region40: #{_lambda_.11} parent=31 // pred_fallthru
              _
          $region32: #{_lambda_.11} parent=27 // pred_fallthru
            _
          %186 = vnop
        $region28: #{_lambda_.11} parent=23 // pred_fallthru
          _
      $region24: #{_lambda_.11} parent=5 // pred_fallthru
        _
      %p187 = scmp.le.s32.totalorder 1, %s9
      %p188 = scmp.lt.s32.totalorder %s9, 3
      %p189 = pnand %p187, %p188
      %p190 = pneg %p189
      // Predicated region
      $region63: #{_lambda_.11} parent=5 // pred_check
        _
      $region64: #{_lambda_.11} parent=5 // pred_check_branch
        %192 = sbr.rel (%p189) target = $region66
      $region65: #{_lambda_.11} parent=5 // pred_region
        %s193 = ssub.s32 %s9, 1
        %s194 = sand.u32 %s43, 1
        %s195 = sand.u32 %s43, 1
        %s196 = smul.addr %s195, 40
        %s197 = scalar_lea.vmem [#allocation2], %s196
        // Predicated region
        $region67: #{_lambda_.11} parent=65 // pred_check
          %p198 = pneg %p56
        $region68: #{_lambda_.11} parent=65 // pred_check_branch
          %200 = sbr.rel (%p198) target = $region70
        $region69: #{_lambda_.11} parent=65 // pred_region
          _
        $region70: #{_lambda_.11} parent=65 // pred_fallthru
          _
        %p201 = pneg %p30
        %p202 = pneg %p27
        %s203 = sand.u32 %s43, 1
        %s204 = sand.u32 %s43, 1
        %s205 = smul.addr %s204, 40
        %s206 = scalar_lea.vmem [#allocation2], %s205
        %p207 = pneg %p56
        %p208 = pneg %p53
        %p209 = pneg %p77
        %p210 = pneg %p74
        %p211 = pneg %p103
        %p212 = pneg %p100
        %s213 = smul.u32 2, %s14
        %p214 = scmp.lt.s32.totalorder %s213, 3
        %s215 = scalar_select %p214, %s213, 3
        %s216 = smul.addr %s215, 8
        %s217 = scalar_lea.vmem %s3, %s216
        %s218 = smul.u32 2, %s14
        %s219 = smul.u32 2, %s14
        %p220 = scmp.lt.s32.totalorder %s219, 3
        %s221 = scalar_select %p220, %s219, 3
        %s222 = smul.addr %s221, 8
        %s223 = scalar_lea.vmem %s3, %s222
        %s224 = smul.u32 2, %s14
        %v226 = vld [vmem:[%s0] sm:$0xf]
        %v227 = vld [vmem:[%s197] sm:$0xff]
        %v228 = vld [vmem:[%s197 + $0x8] sm:$0xff]
        %v229 = vld [vmem:[%s197 + $0x10] sm:$0xff]
        %v230 = vld [vmem:[%s197 + $0x18] sm:$0xff]
        %v231 = vld [vmem:[%s197 + $0x20] sm:$0x33]
        %v232 = vld [vmem:[%s2] sm:$0xff]
        %234 = vset.pattern.permute.xlu0 0
        %235 = vperm.xlu0 %234, %v232
        %v236 = vpop.permute.xlu0 %235
        %v243 = vunpack.c.l.b16 %v227
        %v244 = vunpack.c.h.b16 %v227
        %v245 = vunpack.c.l.b16 %v228
        %v246 = vunpack.c.h.b16 %v228
        %v247 = vunpack.c.l.b16 %v229
        %v248 = vunpack.c.h.b16 %v229
        %v249 = vunpack.c.l.b16 %v230
        %v250 = vunpack.c.h.b16 %v230
        %v251 = vunpack.c.l.b16 %v231
        %v252 = vunpack.c.h.b16 %v231
        %v253 = vpack.c.b16 %v245, %v243
        %v254 = vpack.c.b16 %v246, %v244
        %v255 = vpack.c.b16 %v249, %v247
        %v256 = vpack.c.b16 %v250, %v248
        %v257 = vpack.c.b16 %v251, %v251
        %v258 = vpack.c.b16 %v252, %v252
        %vm263 = vcmask 293888
        %v265 = vsel %vm263, %v226, 0
        %vm267 = vcmask 1041408
        %v269 = vsel %vm267, %v257, 0
        %v272 = vsel %vm267, %v258, 0
        %274 = vmatprep.subr.bf16.mxu0 0
        %275 = vmatpush1.bf16.msra.mxu0 0
        %276 = vmatprep.subr.bf16.mxu0 0
        %277 = vmatpush1.bf16.msra.mxu0 0
        %278 = vmatprep.subr.bf16.mxu0 0
        %279 = vmatpush1.bf16.msra.mxu0 0
        %280 = vmatprep.subr.bf16.mxu0 0
        %281 = vmatpush1.bf16.msra.mxu0 0
        %282 = vmatprep.subr.bf16.mxu0 0
        %283 = vmatpush1.bf16.msra.mxu0 0
        %284 = vmatprep.subr.bf16.mxu0 %v272
        %285 = vmatpush1.bf16.msra.mxu0 %v269
        %286 = vmatprep.subr.bf16.mxu0 %v256
        %287 = vmatpush1.bf16.msra.mxu0 %v255
        %288 = vmatprep.subr.bf16.mxu0 %v254
        %289 = vmatpush1.bf16.msra.mxu0 %v253
        %290 = vmatprep.subr.bf16.mxu0 0
        %291 = vmatpush2.bf16.msra.mxu0 0
        %292 = vmatprep.subr.bf16.mxu0 0
        %293 = vmatpush2.bf16.msra.mxu0 0
        %294 = vmatprep.subr.bf16.mxu0 0
        %295 = vmatpush2.bf16.msra.mxu0 0
        %296 = vmatprep.subr.bf16.mxu0 0
        %297 = vmatpush2.bf16.msra.mxu0 0
        %298 = vmatprep.subr.bf16.mxu0 0
        %299 = vmatpush2.bf16.msra.mxu0 0
        %300 = vmatprep.subr.bf16.mxu0 0
        %301 = vmatpush2.bf16.msra.mxu0 0
        %302 = vmatprep.subr.bf16.mxu0 0
        %303 = vmatpush2.bf16.msra.mxu0 0
        %304 = vmatprep.subr.bf16.mxu0 0
        %305 = vmatpush2.bf16.msra.mxu0 0
        %306 = vmatprep.mubr.bf16.mxu0 0
        %307 = vmatmul.mubr.bf16.gmra.mxu0 %v265
        %v308 = vpop.f32.mrf.mxu0
        %v309 = vadd.f32 %v236, %v308
        %v310 = vpop.f32.mrf.mxu0
        %v311 = vadd.f32 %v236, %v310
        %v312 = vpop.f32.mrf.mxu0
        %v313 = vpop.f32.mrf.mxu0
        %314 = vdwg.mxu0
        %v315 = vmax.f32 %v309, 0.0
        %v316 = vmax.f32 %v311, 0.0
        %317 = vst [vmem:[%s223] sm:$0xff] %v315
        %318 = vst [vmem:[%s223 + $0x8] sm:$0xff] %v316
        %s319 = smul.u32 2, %s14
        %p320 = scmp.lt.s32.totalorder %s319, 3
        %s321 = scalar_select %p320, %s319, 3
        %s322 = smul.addr %s321, 8
        %s323 = scalar_lea.vmem %s3, %s322
        // Predicated region
        $region71: #{_lambda_.11} parent=65 // pred_check
          %p324 = pneg %p100
        $region72: #{_lambda_.11} parent=65 // pred_check_branch
          %326 = sbr.rel (%p324) target = $region74
        $region73: #{_lambda_.11} parent=65 // pred_region
          %s327 = smul.u32 2, %s14
        $region74: #{_lambda_.11} parent=65 // pred_fallthru
          _
      $region66: #{_lambda_.11} parent=5 // pred_fallthru
        _
      %p328 = scmp.le.s32.totalorder 2, %s9
      // Predicated region
      $region75: #{_lambda_.11} parent=5 // pred_check
        %p329 = pneg %p328
      $region76: #{_lambda_.11} parent=5 // pred_check_branch
        %331 = sbr.rel (%p329) target = $region78
      $region77: #{_lambda_.11} parent=5 // pred_region
        %s332 = ssub.s32 %s9, 2
        // Predicated region
        $region79: #{_lambda_.11} parent=77 // pred_check
          %p333 = pneg %p106
        $region80: #{_lambda_.11} parent=77 // pred_check_branch
          %335 = sbr.rel (%p333) target = $region82
        $region81: #{_lambda_.11} parent=77 // pred_region
          %s336 = smul.u32 2, %s15
          %p337 = scmp.lt.s32.totalorder %s336, 3
          %s338 = scalar_select %p337, %s336, 3
          %s339 = smul.addr %s338, 8
          %s340 = scalar_lea.vmem %s3, %s339
        $region82: #{_lambda_.11} parent=77 // pred_fallthru
          _
      $region78: #{_lambda_.11} parent=5 // pred_fallthru
        _
    $region6: #{_lambda_.11} parent=1 // loop_footer
      %s13 = sadd.s32 1, %s9
    $region7: #{_lambda_.11} parent=1 // loop_footer_branch
      %8 = sbr.rel target = $region3
    $region8: #{_lambda_.11} parent=1 // loop_exit
      _

// kernel: _lambda_.12
$region0: #{_lambda_.12}
  #allocation0 [shape = 'u32[]', space=smem, size = 0x4, offset = 0x4, fixed_abs, tag = 'smem constant byte address 0x4 - core index']
  #allocation1 [shape = 'u32[144,128]{1,0:T(1,128)}', space=vmem, size = 0x12000, scoped, tag = 'internal scratch']
  %s0 = inlined_call_operand.vmem [shape: bf16[16,8], index: 0, kind: input, shape index: {}]
  %s1 = inlined_call_operand.vmem [shape: bf16[8,128], index: 1, kind: input, shape index: {}]
  %s2 = inlined_call_operand.vmem [shape: f32[16,1], index: 2, kind: input, shape index: {}]
  %s3 = inlined_call_operand.vmem [shape: f32[16,128], index: 3, kind: output, shape index: {}]
  %s4 = sld [smem:[#allocation0]]
  $region22: #{_lambda_.12} parent=0
    _
  %s6 = ssub.s32 1, %s4
  %s7 = scalar_select 0, %s6, %s4
  // Predicated region
  $region2: #{_lambda_.12} parent=0 // pred_check
    _
  $region3: #{_lambda_.12} parent=0 // pred_check_branch
    %9 = sbr.rel (0) target = $region5
  $region4: #{_lambda_.12} parent=0 // pred_region
    _
  $region5: #{_lambda_.12} parent=0 // pred_fallthru
    _
  // Predicated region
  $region6: #{_lambda_.12} parent=0 // pred_check
    _
  $region7: #{_lambda_.12} parent=0 // pred_check_branch
    %11 = sbr.rel (0) target = $region9
  $region8: #{_lambda_.12} parent=0 // pred_region
    _
  $region9: #{_lambda_.12} parent=0 // pred_fallthru
    _
  // Predicated region
  $region10: #{_lambda_.12} parent=0 // pred_check
    _
  $region11: #{_lambda_.12} parent=0 // pred_check_branch
    %13 = sbr.rel (0) target = $region13
  $region12: #{_lambda_.12} parent=0 // pred_region
    _
  $region13: #{_lambda_.12} parent=0 // pred_fallthru
    _
  %v15 = vld [vmem:[%s0] sm:$0xf]
  %v16 = vld [vmem:[%s0 + $0x4] sm:$0xf]
  %v17 = vld [vmem:[%s1] sm:$0xf]
  %v18 = vld [vmem:[%s2] sm:$0xff]
  %v19 = vld [vmem:[%s2 + $0x8] sm:$0xff]
  %21 = vset.pattern.permute.xlu0 0
  %22 = vperm.xlu0 %21, %v18
  %v23 = vpop.permute.xlu0 %22
  %26 = vset.pattern.permute.xlu0 0
  %27 = vperm.xlu0 %26, %v19
  %v28 = vpop.permute.xlu0 %27
  %v32 = vunpack.c.l.b16 %v15
  %v33 = vunpack.c.l.b16 %v16
  %v34 = vpack.c.b16 %v33, %v32
  %vm35 = vcmask 64512
  %v37 = vsel %vm35, %v34, 0
  %vm39 = vcmask 1043456
  %v41 = vsel %vm39, %v17, 0
  %43 = vmatprep.subr.bf16.mxu0 0
  %44 = vmatpush1.bf16.msra.mxu0 0
  %45 = vmatprep.subr.bf16.mxu0 0
  %46 = vmatpush1.bf16.msra.mxu0 0
  %47 = vmatprep.subr.bf16.mxu0 0
  %48 = vmatpush1.bf16.msra.mxu0 0
  %49 = vmatprep.subr.bf16.mxu0 0
  %50 = vmatpush1.bf16.msra.mxu0 0
  %51 = vmatprep.subr.bf16.mxu0 0
  %52 = vmatpush1.bf16.msra.mxu0 0
  %53 = vmatprep.subr.bf16.mxu0 0
  %54 = vmatpush1.bf16.msra.mxu0 0
  %55 = vmatprep.subr.bf16.mxu0 0
  %56 = vmatpush1.bf16.msra.mxu0 0
  %57 = vmatprep.subr.bf16.mxu0 0
  %58 = vmatpush1.bf16.msra.mxu0 %v41
  %59 = vmatprep.subr.bf16.mxu0 0
  %60 = vmatpush2.bf16.msra.mxu0 0
  %61 = vmatprep.subr.bf16.mxu0 0
  %62 = vmatpush2.bf16.msra.mxu0 0
  %63 = vmatprep.subr.bf16.mxu0 0
  %64 = vmatpush2.bf16.msra.mxu0 0
  %65 = vmatprep.subr.bf16.mxu0 0
  %66 = vmatpush2.bf16.msra.mxu0 0
  %67 = vmatprep.subr.bf16.mxu0 0
  %68 = vmatpush2.bf16.msra.mxu0 0
  %69 = vmatprep.subr.bf16.mxu0 0
  %70 = vmatpush2.bf16.msra.mxu0 0
  %71 = vmatprep.subr.bf16.mxu0 0
  %72 = vmatpush2.bf16.msra.mxu0 0
  %73 = vmatprep.subr.bf16.mxu0 0
  %74 = vmatpush2.bf16.msra.mxu0 0
  %75 = vmatprep.mubr.bf16.mxu0 0
  %76 = vmatmul.mubr.bf16.gmra.mxu0 %v37
  %v77 = vpop.f32.mrf.mxu0
  %v78 = vadd.f32 %v23, %v77
  %v79 = vpop.f32.mrf.mxu0
  %v80 = vpop.f32.mrf.mxu0
  %v81 = vadd.f32 %v28, %v80
  %v82 = vpop.f32.mrf.mxu0
  %83 = vdwg.mxu0
  %84 = vst [vmem:[%s3] sm:$0xff] %v78
  %85 = vst [vmem:[%s3 + $0x8] sm:$0xff] %v81
  // Predicated region
  $region14: #{_lambda_.12} parent=0 // pred_check
    _
  $region15: #{_lambda_.12} parent=0 // pred_check_branch
    %87 = sbr.rel (0) target = $region17
  $region16: #{_lambda_.12} parent=0 // pred_region
    _
  $region17: #{_lambda_.12} parent=0 // pred_fallthru
    _
  // Predicated region
  $region18: #{_lambda_.12} parent=0 // pred_check
    _
  $region19: #{_lambda_.12} parent=0 // pred_check_branch
    %89 = sbr.rel (0) target = $region21
  $region20: #{_lambda_.12} parent=0 // pred_region
    _
  $region21: #{_lambda_.12} parent=0 // pred_fallthru
    _

// kernel: _lambda_.13
$region0: #{_lambda_.13}
  #allocation0 [shape = 'u32[]', space=smem, size = 0x4, offset = 0x4, fixed_abs, tag = 'smem constant byte address 0x4 - core index']
  #allocation1 [shape = 'u32[144,128]{1,0:T(1,128)}', space=vmem, size = 0x12000, scoped, tag = 'internal scratch']
  %s0 = inlined_call_operand.vmem [shape: bf16[16,72], index: 0, kind: input, shape index: {}]
  %s1 = inlined_call_operand.vmem [shape: bf16[72,128], index: 1, kind: input, shape index: {}]
  %s2 = inlined_call_operand.vmem [shape: f32[16,1], index: 2, kind: input, shape index: {}]
  %s3 = inlined_call_operand.vmem [shape: f32[16,128], index: 3, kind: output, shape index: {}]
  %s4 = sld [smem:[#allocation0]]
  $region22: #{_lambda_.13} parent=0
    _
  %s6 = ssub.s32 1, %s4
  %s7 = scalar_select 0, %s6, %s4
  // Predicated region
  $region2: #{_lambda_.13} parent=0 // pred_check
    _
  $region3: #{_lambda_.13} parent=0 // pred_check_branch
    %9 = sbr.rel (0) target = $region5
  $region4: #{_lambda_.13} parent=0 // pred_region
    _
  $region5: #{_lambda_.13} parent=0 // pred_fallthru
    _
  // Predicated region
  $region6: #{_lambda_.13} parent=0 // pred_check
    _
  $region7: #{_lambda_.13} parent=0 // pred_check_branch
    %11 = sbr.rel (0) target = $region9
  $region8: #{_lambda_.13} parent=0 // pred_region
    _
  $region9: #{_lambda_.13} parent=0 // pred_fallthru
    _
  // Predicated region
  $region10: #{_lambda_.13} parent=0 // pred_check
    _
  $region11: #{_lambda_.13} parent=0 // pred_check_branch
    %13 = sbr.rel (0) target = $region13
  $region12: #{_lambda_.13} parent=0 // pred_region
    _
  $region13: #{_lambda_.13} parent=0 // pred_fallthru
    _
  %v15 = vld [vmem:[%s0] sm:$0xf]
  %v16 = vld [vmem:[%s0 + $0x4] sm:$0xf]
  %v17 = vld [vmem:[%s1] sm:$0xf]
  %v18 = vld [vmem:[%s1 + $0x4] sm:$0xf]
  %v19 = vld [vmem:[%s1 + $0x8] sm:$0xf]
  %v20 = vld [vmem:[%s1 + $0xc] sm:$0xf]
  %v21 = vld [vmem:[%s1 + $0x10] sm:$0xf]
  %v22 = vld [vmem:[%s1 + $0x14] sm:$0xf]
  %v23 = vld [vmem:[%s1 + $0x18] sm:$0xf]
  %v24 = vld [vmem:[%s1 + $0x1c] sm:$0xf]
  %v25 = vld [vmem:[%s1 + $0x20] sm:$0xf]
  %v26 = vld [vmem:[%s2] sm:$0xff]
  %v27 = vld [vmem:[%s2 + $0x8] sm:$0xff]
  %29 = vset.pattern.permute.xlu0 0
  %30 = vperm.xlu0 %29, %v26
  %v31 = vpop.permute.xlu0 %30
  %34 = vset.pattern.permute.xlu0 0
  %35 = vperm.xlu0 %34, %v27
  %v36 = vpop.permute.xlu0 %35
  %v40 = vunpack.c.l.b16 %v15
  %v41 = vunpack.c.l.b16 %v16
  %v42 = vpack.c.b16 %v41, %v40
  %v52 = vunpack.c.l.b16 %v17
  %v53 = vunpack.c.l.b16 %v18
  %v54 = vunpack.c.l.b16 %v19
  %v55 = vunpack.c.l.b16 %v20
  %v56 = vunpack.c.l.b16 %v21
  %v57 = vunpack.c.l.b16 %v22
  %v58 = vunpack.c.l.b16 %v23
  %v59 = vunpack.c.l.b16 %v24
  %v60 = vunpack.c.l.b16 %v25
  %v61 = vpack.c.b16 %v53, %v52
  %v62 = vpack.c.b16 %v55, %v54
  %v63 = vpack.c.b16 %v57, %v56
  %v64 = vpack.c.b16 %v59, %v58
  %v65 = vpack.c.b16 %v60, %v60
  %vm70 = vcmask 588800
  %v72 = vsel %vm70, %v42, 0
  %vm74 = vcmask 1043456
  %v76 = vsel %vm74, %v65, 0
  %78 = vmatprep.subr.bf16.mxu0 0
  %79 = vmatpush1.bf16.msra.mxu0 0
  %80 = vmatprep.subr.bf16.mxu0 0
  %81 = vmatpush1.bf16.msra.mxu0 0
  %82 = vmatprep.subr.bf16.mxu0 0
  %83 = vmatpush1.bf16.msra.mxu0 0
  %84 = vmatprep.subr.bf16.mxu0 0
  %85 = vmatpush1.bf16.msra.mxu0 %v76
  %86 = vmatprep.subr.bf16.mxu0 0
  %87 = vmatpush1.bf16.msra.mxu0 %v64
  %88 = vmatprep.subr.bf16.mxu0 0
  %89 = vmatpush1.bf16.msra.mxu0 %v63
  %90 = vmatprep.subr.bf16.mxu0 0
  %91 = vmatpush1.bf16.msra.mxu0 %v62
  %92 = vmatprep.subr.bf16.mxu0 0
  %93 = vmatpush1.bf16.msra.mxu0 %v61
  %94 = vmatprep.subr.bf16.mxu0 0
  %95 = vmatpush2.bf16.msra.mxu0 0
  %96 = vmatprep.subr.bf16.mxu0 0
  %97 = vmatpush2.bf16.msra.mxu0 0
  %98 = vmatprep.subr.bf16.mxu0 0
  %99 = vmatpush2.bf16.msra.mxu0 0
  %100 = vmatprep.subr.bf16.mxu0 0
  %101 = vmatpush2.bf16.msra.mxu0 0
  %102 = vmatprep.subr.bf16.mxu0 0
  %103 = vmatpush2.bf16.msra.mxu0 0
  %104 = vmatprep.subr.bf16.mxu0 0
  %105 = vmatpush2.bf16.msra.mxu0 0
  %106 = vmatprep.subr.bf16.mxu0 0
  %107 = vmatpush2.bf16.msra.mxu0 0
  %108 = vmatprep.subr.bf16.mxu0 0
  %109 = vmatpush2.bf16.msra.mxu0 0
  %110 = vmatprep.mubr.bf16.mxu0 0
  %111 = vmatmul.mubr.bf16.gmra.mxu0 %v72
  %v112 = vpop.f32.mrf.mxu0
  %v113 = vadd.f32 %v31, %v112
  %v114 = vpop.f32.mrf.mxu0
  %v115 = vpop.f32.mrf.mxu0
  %v116 = vadd.f32 %v36, %v115
  %v117 = vpop.f32.mrf.mxu0
  %118 = vdwg.mxu0
  %v119 = vmax.f32 %v113, 0.0
  %v120 = vmax.f32 %v116, 0.0
  %121 = vst [vmem:[%s3] sm:$0xff] %v119
  %122 = vst [vmem:[%s3 + $0x8] sm:$0xff] %v120
  // Predicated region
  $region14: #{_lambda_.13} parent=0 // pred_check
    _
  $region15: #{_lambda_.13} parent=0 // pred_check_branch
    %124 = sbr.rel (0) target = $region17
  $region16: #{_lambda_.13} parent=0 // pred_region
    _
  $region17: #{_lambda_.13} parent=0 // pred_fallthru
    _
  // Predicated region
  $region18: #{_lambda_.13} parent=0 // pred_check
    _
  $region19: #{_lambda_.13} parent=0 // pred_check_branch
    %126 = sbr.rel (0) target = $region21
  $region20: #{_lambda_.13} parent=0 // pred_region
    _
  $region21: #{_lambda_.13} parent=0 // pred_fallthru
    _

// kernel: _lambda_.14
$region0: #{_lambda_.14}
  #allocation0 [shape = 'u32[]', space=smem, size = 0x4, offset = 0x4, fixed_abs, tag = 'smem constant byte address 0x4 - core index']
  #allocation1 [shape = 'u32[144,128]{1,0:T(1,128)}', space=vmem, size = 0x12000, scoped, tag = 'internal scratch']
  %s0 = inlined_call_operand.vmem [shape: bf16[16,144], index: 0, kind: input, shape index: {}]
  %s1 = inlined_call_operand.vmem [shape: bf16[144,128], index: 1, kind: input, shape index: {}]
  %s2 = inlined_call_operand.vmem [shape: f32[16,1], index: 2, kind: input, shape index: {}]
  %s3 = inlined_call_operand.vmem [shape: f32[16,128], index: 3, kind: input, shape index: {}]
  %s4 = inlined_call_operand.vmem [shape: f32[16,128], index: 4, kind: output, shape index: {}]
  %s5 = sld [smem:[#allocation0]]
  $region26: #{_lambda_.14} parent=0
    _
  %s7 = ssub.s32 1, %s5
  %s8 = scalar_select 0, %s7, %s5
  // Predicated region
  $region2: #{_lambda_.14} parent=0 // pred_check
    _
  $region3: #{_lambda_.14} parent=0 // pred_check_branch
    %10 = sbr.rel (0) target = $region5
  $region4: #{_lambda_.14} parent=0 // pred_region
    _
  $region5: #{_lambda_.14} parent=0 // pred_fallthru
    _
  // Predicated region
  $region6: #{_lambda_.14} parent=0 // pred_check
    _
  $region7: #{_lambda_.14} parent=0 // pred_check_branch
    %12 = sbr.rel (0) target = $region9
  $region8: #{_lambda_.14} parent=0 // pred_region
    _
  $region9: #{_lambda_.14} parent=0 // pred_fallthru
    _
  // Predicated region
  $region10: #{_lambda_.14} parent=0 // pred_check
    _
  $region11: #{_lambda_.14} parent=0 // pred_check_branch
    %14 = sbr.rel (0) target = $region13
  $region12: #{_lambda_.14} parent=0 // pred_region
    _
  $region13: #{_lambda_.14} parent=0 // pred_fallthru
    _
  // Predicated region
  $region14: #{_lambda_.14} parent=0 // pred_check
    _
  $region15: #{_lambda_.14} parent=0 // pred_check_branch
    %16 = sbr.rel (0) target = $region17
  $region16: #{_lambda_.14} parent=0 // pred_region
    _
  $region17: #{_lambda_.14} parent=0 // pred_fallthru
    _
  %v18 = vld [vmem:[%s0] sm:$0xff]
  %v19 = vld [vmem:[%s0 + $0x8] sm:$0xff]
  %v20 = vld [vmem:[%s1] sm:$0xf]
  %v21 = vld [vmem:[%s1 + $0x4] sm:$0xf]
  %v22 = vld [vmem:[%s1 + $0x8] sm:$0xf]
  %v23 = vld [vmem:[%s1 + $0xc] sm:$0xf]
  %v24 = vld [vmem:[%s1 + $0x10] sm:$0xf]
  %v25 = vld [vmem:[%s1 + $0x14] sm:$0xf]
  %v26 = vld [vmem:[%s1 + $0x18] sm:$0xf]
  %v27 = vld [vmem:[%s1 + $0x1c] sm:$0xf]
  %v28 = vld [vmem:[%s1 + $0x20] sm:$0xf]
  %v29 = vld [vmem:[%s1 + $0x24] sm:$0xf]
  %v30 = vld [vmem:[%s1 + $0x28] sm:$0xf]
  %v31 = vld [vmem:[%s1 + $0x2c] sm:$0xf]
  %v32 = vld [vmem:[%s1 + $0x30] sm:$0xf]
  %v33 = vld [vmem:[%s1 + $0x34] sm:$0xf]
  %v34 = vld [vmem:[%s1 + $0x38] sm:$0xf]
  %v35 = vld [vmem:[%s1 + $0x3c] sm:$0xf]
  %v36 = vld [vmem:[%s1 + $0x40] sm:$0xf]
  %v37 = vld [vmem:[%s1 + $0x44] sm:$0xf]
  %v38 = vld [vmem:[%s2] sm:$0xff]
  %v39 = vld [vmem:[%s2 + $0x8] sm:$0xff]
  %41 = vset.pattern.permute.xlu0 0
  %42 = vperm.xlu0 %41, %v38
  %v43 = vpop.permute.xlu0 %42
  %46 = vset.pattern.permute.xlu0 0
  %47 = vperm.xlu0 %46, %v39
  %v48 = vpop.permute.xlu0 %47
  %v52 = vunpack.c.l.b16 %v18
  %v53 = vunpack.c.h.b16 %v18
  %v54 = vunpack.c.l.b16 %v19
  %v55 = vunpack.c.h.b16 %v19
  %v56 = vpack.c.b16 %v54, %v52
  %v57 = vpack.c.b16 %v55, %v53
  %v77 = vunpack.c.l.b16 %v20
  %v78 = vunpack.c.l.b16 %v21
  %v79 = vunpack.c.l.b16 %v22
  %v80 = vunpack.c.l.b16 %v23
  %v81 = vunpack.c.l.b16 %v24
  %v82 = vunpack.c.l.b16 %v25
  %v83 = vunpack.c.l.b16 %v26
  %v84 = vunpack.c.l.b16 %v27
  %v85 = vunpack.c.l.b16 %v28
  %v86 = vunpack.c.l.b16 %v29
  %v87 = vunpack.c.l.b16 %v30
  %v88 = vunpack.c.l.b16 %v31
  %v89 = vunpack.c.l.b16 %v32
  %v90 = vunpack.c.l.b16 %v33
  %v91 = vunpack.c.l.b16 %v34
  %v92 = vunpack.c.l.b16 %v35
  %v93 = vunpack.c.l.b16 %v36
  %v94 = vunpack.c.l.b16 %v37
  %v95 = vpack.c.b16 %v78, %v77
  %v96 = vpack.c.b16 %v80, %v79
  %v97 = vpack.c.b16 %v82, %v81
  %v98 = vpack.c.b16 %v84, %v83
  %v99 = vpack.c.b16 %v86, %v85
  %v100 = vpack.c.b16 %v88, %v87
  %v101 = vpack.c.b16 %v90, %v89
  %v102 = vpack.c.b16 %v92, %v91
  %v103 = vpack.c.b16 %v94, %v93
  %vm113 = vcmask 130048
  %v115 = vsel %vm113, %v57, 0
  %117 = vmatprep.subr.bf16.mxu0 0
  %118 = vmatpush1.bf16.msra.mxu0 %v102
  %119 = vmatprep.subr.bf16.mxu0 0
  %120 = vmatpush1.bf16.msra.mxu0 %v101
  %121 = vmatprep.subr.bf16.mxu0 0
  %122 = vmatpush1.bf16.msra.mxu0 %v100
  %123 = vmatprep.subr.bf16.mxu0 0
  %124 = vmatpush1.bf16.msra.mxu0 %v99
  %125 = vmatprep.subr.bf16.mxu0 0
  %126 = vmatpush1.bf16.msra.mxu0 %v98
  %127 = vmatprep.subr.bf16.mxu0 0
  %128 = vmatpush1.bf16.msra.mxu0 %v97
  %129 = vmatprep.subr.bf16.mxu0 0
  %130 = vmatpush1.bf16.msra.mxu0 %v96
  %131 = vmatprep.subr.bf16.mxu0 0
  %132 = vmatpush1.bf16.msra.mxu0 %v95
  %133 = vmatprep.subr.bf16.mxu0 0
  %134 = vmatpush2.bf16.msra.mxu0 0
  %135 = vmatprep.subr.bf16.mxu0 0
  %136 = vmatpush2.bf16.msra.mxu0 0
  %137 = vmatprep.subr.bf16.mxu0 0
  %138 = vmatpush2.bf16.msra.mxu0 0
  %139 = vmatprep.subr.bf16.mxu0 0
  %140 = vmatpush2.bf16.msra.mxu0 0
  %141 = vmatprep.subr.bf16.mxu0 0
  %142 = vmatpush2.bf16.msra.mxu0 0
  %143 = vmatprep.subr.bf16.mxu0 0
  %144 = vmatpush2.bf16.msra.mxu0 0
  %145 = vmatprep.subr.bf16.mxu0 0
  %146 = vmatpush2.bf16.msra.mxu0 0
  %147 = vmatprep.subr.bf16.mxu0 0
  %148 = vmatpush2.bf16.msra.mxu0 %v103
  %149 = vmatprep.mubr.bf16.mxu0 %v115
  %150 = vmatmul.mubr.bf16.gmra.mxu0 %v56
  %v151 = vpop.f32.mrf.mxu0
  %v152 = vadd.f32 %v43, %v151
  %v153 = vpop.f32.mrf.mxu0
  %v154 = vpop.f32.mrf.mxu0
  %v155 = vadd.f32 %v48, %v154
  %v156 = vpop.f32.mrf.mxu0
  %157 = vdwg.mxu0
  %v158 = vld [vmem:[%s3] sm:$0xff]
  %v159 = vld [vmem:[%s3 + $0x8] sm:$0xff]
  %v160 = vadd.f32 %v152, %v158
  %v161 = vadd.f32 %v155, %v159
  %v162 = vmax.f32 %v160, 0.0
  %v163 = vmax.f32 %v161, 0.0
  %164 = vst [vmem:[%s4] sm:$0xff] %v162
  %165 = vst [vmem:[%s4 + $0x8] sm:$0xff] %v163
  // Predicated region
  $region18: #{_lambda_.14} parent=0 // pred_check
    _
  $region19: #{_lambda_.14} parent=0 // pred_check_branch
    %167 = sbr.rel (0) target = $region21
  $region20: #{_lambda_.14} parent=0 // pred_region
    _
  $region21: #{_lambda_.14} parent=0 // pred_fallthru
    _
  // Predicated region
  $region22: #{_lambda_.14} parent=0 // pred_check
    _
  $region23: #{_lambda_.14} parent=0 // pred_check_branch
    %169 = sbr.rel (0) target = $region25
  $region24: #{_lambda_.14} parent=0 // pred_region
    _
  $region25: #{_lambda_.14} parent=0 // pred_fallthru
    _

// kernel: _lambda_.15
$region0: #{_lambda_.15}
  #allocation0 [shape = 'u32[]', space=smem, size = 0x4, offset = 0x4, fixed_abs, tag = 'smem constant byte address 0x4 - core index']
  #allocation1 [shape = 'u32[144,128]{1,0:T(1,128)}', space=vmem, size = 0x12000, scoped, tag = 'internal scratch']
  %s0 = inlined_call_operand.vmem [shape: bf16[16,16], index: 0, kind: input, shape index: {}]
  %s1 = inlined_call_operand.vmem [shape: bf16[16,128], index: 1, kind: input, shape index: {}]
  %s2 = inlined_call_operand.vmem [shape: f32[16,1], index: 2, kind: input, shape index: {}]
  %s3 = inlined_call_operand.vmem [shape: f32[16,128], index: 3, kind: output, shape index: {}]
  %s4 = sld [smem:[#allocation0]]
  $region22: #{_lambda_.15} parent=0
    _
  %s6 = ssub.s32 1, %s4
  %s7 = scalar_select 0, %s6, %s4
  // Predicated region
  $region2: #{_lambda_.15} parent=0 // pred_check
    _
  $region3: #{_lambda_.15} parent=0 // pred_check_branch
    %9 = sbr.rel (0) target = $region5
  $region4: #{_lambda_.15} parent=0 // pred_region
    _
  $region5: #{_lambda_.15} parent=0 // pred_fallthru
    _
  // Predicated region
  $region6: #{_lambda_.15} parent=0 // pred_check
    _
  $region7: #{_lambda_.15} parent=0 // pred_check_branch
    %11 = sbr.rel (0) target = $region9
  $region8: #{_lambda_.15} parent=0 // pred_region
    _
  $region9: #{_lambda_.15} parent=0 // pred_fallthru
    _
  // Predicated region
  $region10: #{_lambda_.15} parent=0 // pred_check
    _
  $region11: #{_lambda_.15} parent=0 // pred_check_branch
    %13 = sbr.rel (0) target = $region13
  $region12: #{_lambda_.15} parent=0 // pred_region
    _
  $region13: #{_lambda_.15} parent=0 // pred_fallthru
    _
  %v15 = vld [vmem:[%s0] sm:$0xf]
  %v16 = vld [vmem:[%s0 + $0x4] sm:$0xf]
  %v17 = vld [vmem:[%s1] sm:$0xf]
  %v18 = vld [vmem:[%s1 + $0x4] sm:$0xf]
  %v19 = vld [vmem:[%s2] sm:$0xff]
  %v20 = vld [vmem:[%s2 + $0x8] sm:$0xff]
  %22 = vset.pattern.permute.xlu0 0
  %23 = vperm.xlu0 %22, %v19
  %v24 = vpop.permute.xlu0 %23
  %27 = vset.pattern.permute.xlu0 0
  %28 = vperm.xlu0 %27, %v20
  %v29 = vpop.permute.xlu0 %28
  %v33 = vunpack.c.l.b16 %v15
  %v34 = vunpack.c.l.b16 %v16
  %v35 = vpack.c.b16 %v34, %v33
  %v38 = vunpack.c.l.b16 %v17
  %v39 = vunpack.c.l.b16 %v18
  %v40 = vpack.c.b16 %v39, %v38
  %vm42 = vcmask 130048
  %v44 = vsel %vm42, %v35, 0
  %46 = vmatprep.subr.bf16.mxu0 0
  %47 = vmatpush1.bf16.msra.mxu0 0
  %48 = vmatprep.subr.bf16.mxu0 0
  %49 = vmatpush1.bf16.msra.mxu0 0
  %50 = vmatprep.subr.bf16.mxu0 0
  %51 = vmatpush1.bf16.msra.mxu0 0
  %52 = vmatprep.subr.bf16.mxu0 0
  %53 = vmatpush1.bf16.msra.mxu0 0
  %54 = vmatprep.subr.bf16.mxu0 0
  %55 = vmatpush1.bf16.msra.mxu0 0
  %56 = vmatprep.subr.bf16.mxu0 0
  %57 = vmatpush1.bf16.msra.mxu0 0
  %58 = vmatprep.subr.bf16.mxu0 0
  %59 = vmatpush1.bf16.msra.mxu0 0
  %60 = vmatprep.subr.bf16.mxu0 0
  %61 = vmatpush1.bf16.msra.mxu0 %v40
  %62 = vmatprep.subr.bf16.mxu0 0
  %63 = vmatpush2.bf16.msra.mxu0 0
  %64 = vmatprep.subr.bf16.mxu0 0
  %65 = vmatpush2.bf16.msra.mxu0 0
  %66 = vmatprep.subr.bf16.mxu0 0
  %67 = vmatpush2.bf16.msra.mxu0 0
  %68 = vmatprep.subr.bf16.mxu0 0
  %69 = vmatpush2.bf16.msra.mxu0 0
  %70 = vmatprep.subr.bf16.mxu0 0
  %71 = vmatpush2.bf16.msra.mxu0 0
  %72 = vmatprep.subr.bf16.mxu0 0
  %73 = vmatpush2.bf16.msra.mxu0 0
  %74 = vmatprep.subr.bf16.mxu0 0
  %75 = vmatpush2.bf16.msra.mxu0 0
  %76 = vmatprep.subr.bf16.mxu0 0
  %77 = vmatpush2.bf16.msra.mxu0 0
  %78 = vmatprep.mubr.bf16.mxu0 0
  %79 = vmatmul.mubr.bf16.gmra.mxu0 %v44
  %v80 = vpop.f32.mrf.mxu0
  %v81 = vadd.f32 %v24, %v80
  %v82 = vpop.f32.mrf.mxu0
  %v83 = vpop.f32.mrf.mxu0
  %v84 = vadd.f32 %v29, %v83
  %v85 = vpop.f32.mrf.mxu0
  %86 = vdwg.mxu0
  %87 = vst [vmem:[%s3] sm:$0xff] %v81
  %88 = vst [vmem:[%s3 + $0x8] sm:$0xff] %v84
  // Predicated region
  $region14: #{_lambda_.15} parent=0 // pred_check
    _
  $region15: #{_lambda_.15} parent=0 // pred_check_branch
    %90 = sbr.rel (0) target = $region17
  $region16: #{_lambda_.15} parent=0 // pred_region
    _
  $region17: #{_lambda_.15} parent=0 // pred_fallthru
    _
  // Predicated region
  $region18: #{_lambda_.15} parent=0 // pred_check
    _
  $region19: #{_lambda_.15} parent=0 // pred_check_branch
    %92 = sbr.rel (0) target = $region21
  $region20: #{_lambda_.15} parent=0 // pred_region
    _
  $region21: #{_lambda_.15} parent=0 // pred_fallthru
    _

// kernel: _lambda_.16
$region0: #{_lambda_.16}
  #allocation0 [shape = 'u32[]', space=smem, size = 0x4, offset = 0x4, fixed_abs, tag = 'smem constant byte address 0x4 - core index']
  #allocation1 [shape = 'u32[144,128]{1,0:T(1,128)}', space=vmem, size = 0x12000, scoped, tag = 'internal scratch']
  %s0 = inlined_call_operand.vmem [shape: bf16[8,16], index: 0, kind: input, shape index: {}]
  %s1 = inlined_call_operand.vmem [shape: bf16[16,128], index: 1, kind: input, shape index: {}]
  %s2 = inlined_call_operand.vmem [shape: f32[8,1], index: 2, kind: input, shape index: {}]
  %s3 = inlined_call_operand.vmem [shape: f32[8,128], index: 3, kind: output, shape index: {}]
  %s4 = sld [smem:[#allocation0]]
  $region22: #{_lambda_.16} parent=0
    _
  %s6 = ssub.s32 1, %s4
  %s7 = scalar_select 0, %s6, %s4
  // Predicated region
  $region2: #{_lambda_.16} parent=0 // pred_check
    _
  $region3: #{_lambda_.16} parent=0 // pred_check_branch
    %9 = sbr.rel (0) target = $region5
  $region4: #{_lambda_.16} parent=0 // pred_region
    _
  $region5: #{_lambda_.16} parent=0 // pred_fallthru
    _
  // Predicated region
  $region6: #{_lambda_.16} parent=0 // pred_check
    _
  $region7: #{_lambda_.16} parent=0 // pred_check_branch
    %11 = sbr.rel (0) target = $region9
  $region8: #{_lambda_.16} parent=0 // pred_region
    _
  $region9: #{_lambda_.16} parent=0 // pred_fallthru
    _
  // Predicated region
  $region10: #{_lambda_.16} parent=0 // pred_check
    _
  $region11: #{_lambda_.16} parent=0 // pred_check_branch
    %13 = sbr.rel (0) target = $region13
  $region12: #{_lambda_.16} parent=0 // pred_region
    _
  $region13: #{_lambda_.16} parent=0 // pred_fallthru
    _
  %v15 = vld [vmem:[%s0] sm:$0xf]
  %v16 = vld [vmem:[%s1] sm:$0xf]
  %v17 = vld [vmem:[%s1 + $0x4] sm:$0xf]
  %v18 = vld [vmem:[%s2] sm:$0xff]
  %20 = vset.pattern.permute.xlu0 0
  %21 = vperm.xlu0 %20, %v18
  %v22 = vpop.permute.xlu0 %21
  %v26 = vunpack.c.l.b16 %v16
  %v27 = vunpack.c.l.b16 %v17
  %v28 = vpack.c.b16 %v27, %v26
  %vm30 = vcmask 130048
  %v32 = vsel %vm30, %v15, 0
  %34 = vmatprep.subr.bf16.mxu0 0
  %35 = vmatpush1.bf16.msra.mxu0 0
  %36 = vmatprep.subr.bf16.mxu0 0
  %37 = vmatpush1.bf16.msra.mxu0 0
  %38 = vmatprep.subr.bf16.mxu0 0
  %39 = vmatpush1.bf16.msra.mxu0 0
  %40 = vmatprep.subr.bf16.mxu0 0
  %41 = vmatpush1.bf16.msra.mxu0 0
  %42 = vmatprep.subr.bf16.mxu0 0
  %43 = vmatpush1.bf16.msra.mxu0 0
  %44 = vmatprep.subr.bf16.mxu0 0
  %45 = vmatpush1.bf16.msra.mxu0 0
  %46 = vmatprep.subr.bf16.mxu0 0
  %47 = vmatpush1.bf16.msra.mxu0 0
  %48 = vmatprep.subr.bf16.mxu0 0
  %49 = vmatpush1.bf16.msra.mxu0 %v28
  %50 = vmatprep.subr.bf16.mxu0 0
  %51 = vmatpush2.bf16.msra.mxu0 0
  %52 = vmatprep.subr.bf16.mxu0 0
  %53 = vmatpush2.bf16.msra.mxu0 0
  %54 = vmatprep.subr.bf16.mxu0 0
  %55 = vmatpush2.bf16.msra.mxu0 0
  %56 = vmatprep.subr.bf16.mxu0 0
  %57 = vmatpush2.bf16.msra.mxu0 0
  %58 = vmatprep.subr.bf16.mxu0 0
  %59 = vmatpush2.bf16.msra.mxu0 0
  %60 = vmatprep.subr.bf16.mxu0 0
  %61 = vmatpush2.bf16.msra.mxu0 0
  %62 = vmatprep.subr.bf16.mxu0 0
  %63 = vmatpush2.bf16.msra.mxu0 0
  %64 = vmatprep.subr.bf16.mxu0 0
  %65 = vmatpush2.bf16.msra.mxu0 0
  %66 = vmatprep.mubr.bf16.mxu0 0
  %67 = vmatmul.mubr.bf16.gmra.mxu0 %v32
  %v68 = vpop.f32.mrf.mxu0
  %v69 = vadd.f32 %v22, %v68
  %v70 = vpop.f32.mrf.mxu0
  %v71 = vpop.f32.mrf.mxu0
  %v72 = vpop.f32.mrf.mxu0
  %73 = vdwg.mxu0
  %v74 = vmax.f32 %v69, 0.0
  %75 = vst [vmem:[%s3] sm:$0xff] %v74
  // Predicated region
  $region14: #{_lambda_.16} parent=0 // pred_check
    _
  $region15: #{_lambda_.16} parent=0 // pred_check_branch
    %77 = sbr.rel (0) target = $region17
  $region16: #{_lambda_.16} parent=0 // pred_region
    _
  $region17: #{_lambda_.16} parent=0 // pred_fallthru
    _
  // Predicated region
  $region18: #{_lambda_.16} parent=0 // pred_check
    _
  $region19: #{_lambda_.16} parent=0 // pred_check_branch
    %79 = sbr.rel (0) target = $region21
  $region20: #{_lambda_.16} parent=0 // pred_region
    _
  $region21: #{_lambda_.16} parent=0 // pred_fallthru
    _

// kernel: _lambda_.18
$region0: #{_lambda_.18}
  #allocation0 [shape = 'u32[]', space=smem, size = 0x4, offset = 0x4, fixed_abs, tag = 'smem constant byte address 0x4 - core index']
  #allocation1 [shape = 'u32[144,128]{1,0:T(1,128)}', space=vmem, size = 0x12000, scoped, tag = 'internal scratch']
  %s0 = inlined_call_operand.vmem [shape: bf16[16,8], index: 0, kind: input, shape index: {}]
  %s1 = inlined_call_operand.vmem [shape: bf16[8,128], index: 1, kind: input, shape index: {}]
  %s2 = inlined_call_operand.vmem [shape: f32[16,1], index: 2, kind: input, shape index: {}]
  %s3 = inlined_call_operand.vmem [shape: f32[16,128], index: 3, kind: input, shape index: {}]
  %s4 = inlined_call_operand.vmem [shape: f32[16,128], index: 4, kind: output, shape index: {}]
  %s5 = sld [smem:[#allocation0]]
  $region26: #{_lambda_.18} parent=0
    _
  %s7 = ssub.s32 1, %s5
  %s8 = scalar_select 0, %s7, %s5
  // Predicated region
  $region2: #{_lambda_.18} parent=0 // pred_check
    _
  $region3: #{_lambda_.18} parent=0 // pred_check_branch
    %10 = sbr.rel (0) target = $region5
  $region4: #{_lambda_.18} parent=0 // pred_region
    _
  $region5: #{_lambda_.18} parent=0 // pred_fallthru
    _
  // Predicated region
  $region6: #{_lambda_.18} parent=0 // pred_check
    _
  $region7: #{_lambda_.18} parent=0 // pred_check_branch
    %12 = sbr.rel (0) target = $region9
  $region8: #{_lambda_.18} parent=0 // pred_region
    _
  $region9: #{_lambda_.18} parent=0 // pred_fallthru
    _
  // Predicated region
  $region10: #{_lambda_.18} parent=0 // pred_check
    _
  $region11: #{_lambda_.18} parent=0 // pred_check_branch
    %14 = sbr.rel (0) target = $region13
  $region12: #{_lambda_.18} parent=0 // pred_region
    _
  $region13: #{_lambda_.18} parent=0 // pred_fallthru
    _
  // Predicated region
  $region14: #{_lambda_.18} parent=0 // pred_check
    _
  $region15: #{_lambda_.18} parent=0 // pred_check_branch
    %16 = sbr.rel (0) target = $region17
  $region16: #{_lambda_.18} parent=0 // pred_region
    _
  $region17: #{_lambda_.18} parent=0 // pred_fallthru
    _
  %v18 = vld [vmem:[%s0] sm:$0xf]
  %v19 = vld [vmem:[%s0 + $0x4] sm:$0xf]
  %v20 = vld [vmem:[%s1] sm:$0xf]
  %v21 = vld [vmem:[%s2] sm:$0xff]
  %v22 = vld [vmem:[%s2 + $0x8] sm:$0xff]
  %24 = vset.pattern.permute.xlu0 0
  %25 = vperm.xlu0 %24, %v21
  %v26 = vpop.permute.xlu0 %25
  %29 = vset.pattern.permute.xlu0 0
  %30 = vperm.xlu0 %29, %v22
  %v31 = vpop.permute.xlu0 %30
  %v35 = vunpack.c.l.b16 %v18
  %v36 = vunpack.c.l.b16 %v19
  %v37 = vpack.c.b16 %v36, %v35
  %vm38 = vcmask 64512
  %v40 = vsel %vm38, %v37, 0
  %vm42 = vcmask 1043456
  %v44 = vsel %vm42, %v20, 0
  %46 = vmatprep.subr.bf16.mxu0 0
  %47 = vmatpush1.bf16.msra.mxu0 0
  %48 = vmatprep.subr.bf16.mxu0 0
  %49 = vmatpush1.bf16.msra.mxu0 0
  %50 = vmatprep.subr.bf16.mxu0 0
  %51 = vmatpush1.bf16.msra.mxu0 0
  %52 = vmatprep.subr.bf16.mxu0 0
  %53 = vmatpush1.bf16.msra.mxu0 0
  %54 = vmatprep.subr.bf16.mxu0 0
  %55 = vmatpush1.bf16.msra.mxu0 0
  %56 = vmatprep.subr.bf16.mxu0 0
  %57 = vmatpush1.bf16.msra.mxu0 0
  %58 = vmatprep.subr.bf16.mxu0 0
  %59 = vmatpush1.bf16.msra.mxu0 0
  %60 = vmatprep.subr.bf16.mxu0 0
  %61 = vmatpush1.bf16.msra.mxu0 %v44
  %62 = vmatprep.subr.bf16.mxu0 0
  %63 = vmatpush2.bf16.msra.mxu0 0
  %64 = vmatprep.subr.bf16.mxu0 0
  %65 = vmatpush2.bf16.msra.mxu0 0
  %66 = vmatprep.subr.bf16.mxu0 0
  %67 = vmatpush2.bf16.msra.mxu0 0
  %68 = vmatprep.subr.bf16.mxu0 0
  %69 = vmatpush2.bf16.msra.mxu0 0
  %70 = vmatprep.subr.bf16.mxu0 0
  %71 = vmatpush2.bf16.msra.mxu0 0
  %72 = vmatprep.subr.bf16.mxu0 0
  %73 = vmatpush2.bf16.msra.mxu0 0
  %74 = vmatprep.subr.bf16.mxu0 0
  %75 = vmatpush2.bf16.msra.mxu0 0
  %76 = vmatprep.subr.bf16.mxu0 0
  %77 = vmatpush2.bf16.msra.mxu0 0
  %78 = vmatprep.mubr.bf16.mxu0 0
  %79 = vmatmul.mubr.bf16.gmra.mxu0 %v40
  %v80 = vpop.f32.mrf.mxu0
  %v81 = vadd.f32 %v26, %v80
  %v82 = vpop.f32.mrf.mxu0
  %v83 = vpop.f32.mrf.mxu0
  %v84 = vadd.f32 %v31, %v83
  %v85 = vpop.f32.mrf.mxu0
  %86 = vdwg.mxu0
  %v87 = vld [vmem:[%s3] sm:$0xff]
  %v88 = vld [vmem:[%s3 + $0x8] sm:$0xff]
  %v89 = vadd.f32 %v81, %v87
  %v90 = vadd.f32 %v84, %v88
  %v91 = vmax.f32 %v89, 0.0
  %v92 = vmax.f32 %v90, 0.0
  %93 = vst [vmem:[%s4] sm:$0xff] %v91
  %94 = vst [vmem:[%s4 + $0x8] sm:$0xff] %v92
  // Predicated region
  $region18: #{_lambda_.18} parent=0 // pred_check
    _
  $region19: #{_lambda_.18} parent=0 // pred_check_branch
    %96 = sbr.rel (0) target = $region21
  $region20: #{_lambda_.18} parent=0 // pred_region
    _
  $region21: #{_lambda_.18} parent=0 // pred_fallthru
    _
  // Predicated region
  $region22: #{_lambda_.18} parent=0 // pred_check
    _
  $region23: #{_lambda_.18} parent=0 // pred_check_branch
    %98 = sbr.rel (0) target = $region25
  $region24: #{_lambda_.18} parent=0 // pred_region
    _
  $region25: #{_lambda_.18} parent=0 // pred_fallthru
    _

// kernel: _lambda_.17
$region0: #{_lambda_.17}
  #allocation0 [shape = 'u32[]', space=smem, size = 0x4, offset = 0x4, fixed_abs, tag = 'smem constant byte address 0x4 - core index']
  #allocation1 [shape = 'u32[144,128]{1,0:T(1,128)}', space=vmem, size = 0x12000, scoped, tag = 'internal scratch']
  %s0 = inlined_call_operand.vmem [shape: bf16[8,72], index: 0, kind: input, shape index: {}]
  %s1 = inlined_call_operand.vmem [shape: bf16[72,128], index: 1, kind: input, shape index: {}]
  %s2 = inlined_call_operand.vmem [shape: f32[8,1], index: 2, kind: input, shape index: {}]
  %s3 = inlined_call_operand.vmem [shape: f32[8,128], index: 3, kind: output, shape index: {}]
  %s4 = sld [smem:[#allocation0]]
  $region22: #{_lambda_.17} parent=0
    _
  %s6 = ssub.s32 1, %s4
  %s7 = scalar_select 0, %s6, %s4
  // Predicated region
  $region2: #{_lambda_.17} parent=0 // pred_check
    _
  $region3: #{_lambda_.17} parent=0 // pred_check_branch
    %9 = sbr.rel (0) target = $region5
  $region4: #{_lambda_.17} parent=0 // pred_region
    _
  $region5: #{_lambda_.17} parent=0 // pred_fallthru
    _
  // Predicated region
  $region6: #{_lambda_.17} parent=0 // pred_check
    _
  $region7: #{_lambda_.17} parent=0 // pred_check_branch
    %11 = sbr.rel (0) target = $region9
  $region8: #{_lambda_.17} parent=0 // pred_region
    _
  $region9: #{_lambda_.17} parent=0 // pred_fallthru
    _
  // Predicated region
  $region10: #{_lambda_.17} parent=0 // pred_check
    _
  $region11: #{_lambda_.17} parent=0 // pred_check_branch
    %13 = sbr.rel (0) target = $region13
  $region12: #{_lambda_.17} parent=0 // pred_region
    _
  $region13: #{_lambda_.17} parent=0 // pred_fallthru
    _
  %v15 = vld [vmem:[%s0] sm:$0xf]
  %v16 = vld [vmem:[%s1] sm:$0xf]
  %v17 = vld [vmem:[%s1 + $0x4] sm:$0xf]
  %v18 = vld [vmem:[%s1 + $0x8] sm:$0xf]
  %v19 = vld [vmem:[%s1 + $0xc] sm:$0xf]
  %v20 = vld [vmem:[%s1 + $0x10] sm:$0xf]
  %v21 = vld [vmem:[%s1 + $0x14] sm:$0xf]
  %v22 = vld [vmem:[%s1 + $0x18] sm:$0xf]
  %v23 = vld [vmem:[%s1 + $0x1c] sm:$0xf]
  %v24 = vld [vmem:[%s1 + $0x20] sm:$0xf]
  %v25 = vld [vmem:[%s2] sm:$0xff]
  %27 = vset.pattern.permute.xlu0 0
  %28 = vperm.xlu0 %27, %v25
  %v29 = vpop.permute.xlu0 %28
  %v40 = vunpack.c.l.b16 %v16
  %v41 = vunpack.c.l.b16 %v17
  %v42 = vunpack.c.l.b16 %v18
  %v43 = vunpack.c.l.b16 %v19
  %v44 = vunpack.c.l.b16 %v20
  %v45 = vunpack.c.l.b16 %v21
  %v46 = vunpack.c.l.b16 %v22
  %v47 = vunpack.c.l.b16 %v23
  %v48 = vunpack.c.l.b16 %v24
  %v49 = vpack.c.b16 %v41, %v40
  %v50 = vpack.c.b16 %v43, %v42
  %v51 = vpack.c.b16 %v45, %v44
  %v52 = vpack.c.b16 %v47, %v46
  %v53 = vpack.c.b16 %v48, %v48
  %vm58 = vcmask 588800
  %v60 = vsel %vm58, %v15, 0
  %vm62 = vcmask 1043456
  %v64 = vsel %vm62, %v53, 0
  %66 = vmatprep.subr.bf16.mxu0 0
  %67 = vmatpush1.bf16.msra.mxu0 0
  %68 = vmatprep.subr.bf16.mxu0 0
  %69 = vmatpush1.bf16.msra.mxu0 0
  %70 = vmatprep.subr.bf16.mxu0 0
  %71 = vmatpush1.bf16.msra.mxu0 0
  %72 = vmatprep.subr.bf16.mxu0 0
  %73 = vmatpush1.bf16.msra.mxu0 %v64
  %74 = vmatprep.subr.bf16.mxu0 0
  %75 = vmatpush1.bf16.msra.mxu0 %v52
  %76 = vmatprep.subr.bf16.mxu0 0
  %77 = vmatpush1.bf16.msra.mxu0 %v51
  %78 = vmatprep.subr.bf16.mxu0 0
  %79 = vmatpush1.bf16.msra.mxu0 %v50
  %80 = vmatprep.subr.bf16.mxu0 0
  %81 = vmatpush1.bf16.msra.mxu0 %v49
  %82 = vmatprep.subr.bf16.mxu0 0
  %83 = vmatpush2.bf16.msra.mxu0 0
  %84 = vmatprep.subr.bf16.mxu0 0
  %85 = vmatpush2.bf16.msra.mxu0 0
  %86 = vmatprep.subr.bf16.mxu0 0
  %87 = vmatpush2.bf16.msra.mxu0 0
  %88 = vmatprep.subr.bf16.mxu0 0
  %89 = vmatpush2.bf16.msra.mxu0 0
  %90 = vmatprep.subr.bf16.mxu0 0
  %91 = vmatpush2.bf16.msra.mxu0 0
  %92 = vmatprep.subr.bf16.mxu0 0
  %93 = vmatpush2.bf16.msra.mxu0 0
  %94 = vmatprep.subr.bf16.mxu0 0
  %95 = vmatpush2.bf16.msra.mxu0 0
  %96 = vmatprep.subr.bf16.mxu0 0
  %97 = vmatpush2.bf16.msra.mxu0 0
  %98 = vmatprep.mubr.bf16.mxu0 0
  %99 = vmatmul.mubr.bf16.gmra.mxu0 %v60
  %v100 = vpop.f32.mrf.mxu0
  %v101 = vadd.f32 %v29, %v100
  %v102 = vpop.f32.mrf.mxu0
  %v103 = vpop.f32.mrf.mxu0
  %v104 = vpop.f32.mrf.mxu0
  %105 = vdwg.mxu0
  %v106 = vmax.f32 %v101, 0.0
  %107 = vst [vmem:[%s3] sm:$0xff] %v106
  // Predicated region
  $region14: #{_lambda_.17} parent=0 // pred_check
    _
  $region15: #{_lambda_.17} parent=0 // pred_check_branch
    %109 = sbr.rel (0) target = $region17
  $region16: #{_lambda_.17} parent=0 // pred_region
    _
  $region17: #{_lambda_.17} parent=0 // pred_fallthru
    _
  // Predicated region
  $region18: #{_lambda_.17} parent=0 // pred_check
    _
  $region19: #{_lambda_.17} parent=0 // pred_check_branch
    %111 = sbr.rel (0) target = $region21
  $region20: #{_lambda_.17} parent=0 // pred_region
    _
  $region21: #{_lambda_.17} parent=0 // pred_fallthru
    _

// kernel: _lambda_.21
$region0: #{_lambda_.21}
  #allocation0 [shape = 'u32[]', space=smem, size = 0x4, offset = 0x4, fixed_abs, tag = 'smem constant byte address 0x4 - core index']
  #allocation1 [shape = 'u32[144,128]{1,0:T(1,128)}', space=vmem, size = 0x12000, scoped, tag = 'internal scratch']
  %s0 = inlined_call_operand.vmem [shape: f32[2,16,16], index: 0, kind: input, shape index: {}]
  %s1 = inlined_call_operand.vmem [shape: f32[16,10], index: 1, kind: input, shape index: {}]
  %s2 = inlined_call_operand.vmem [shape: f32[1,10], index: 2, kind: input, shape index: {}]
  %s3 = inlined_call_operand.hbm [shape: f32[2,10], index: 3, kind: output, shape index: {}]
  %s4 = sld [smem:[#allocation0]]
  $region22: #{_lambda_.21} parent=0
    _
  %s6 = ssub.s32 1, %s4
  %s7 = scalar_select 0, %s6, %s4
  $region1: #{_lambda_.21} parent=0
    #allocation2 [shape = 'u8[1024]{0}', space=vmem, size = 0x400, scoped, tag = 'output window, operand 0, single buffered']
    #allocation3 [shape = 's32[1]{0}', space=sflag, size = 0x4, scoped, tag = 'scoped memory for _lambda_.21']
    %8 = vsyncpa [#allocation3], 0
    // Predicated region
    $region2: #{_lambda_.21} parent=1 // pred_check
      _
    $region3: #{_lambda_.21} parent=1 // pred_check_branch
      %10 = sbr.rel (0) target = $region5
    $region4: #{_lambda_.21} parent=1 // pred_region
      _
    $region5: #{_lambda_.21} parent=1 // pred_fallthru
      _
    // Predicated region
    $region6: #{_lambda_.21} parent=1 // pred_check
      _
    $region7: #{_lambda_.21} parent=1 // pred_check_branch
      %12 = sbr.rel (0) target = $region9
    $region8: #{_lambda_.21} parent=1 // pred_region
      _
    $region9: #{_lambda_.21} parent=1 // pred_fallthru
      _
    // Predicated region
    $region10: #{_lambda_.21} parent=1 // pred_check
      _
    $region11: #{_lambda_.21} parent=1 // pred_check_branch
      %14 = sbr.rel (0) target = $region13
    $region12: #{_lambda_.21} parent=1 // pred_region
      _
    $region13: #{_lambda_.21} parent=1 // pred_fallthru
      _
    %v15 = vld [vmem:[%s0] sm:$0xff]
    %v16 = vld [vmem:[%s0 + $0x8] sm:$0xff]
    %v17 = vld [vmem:[%s0 + $0x10] sm:$0xff]
    %v18 = vld [vmem:[%s0 + $0x18] sm:$0xff]
    %vm19 = vcmask 130048
    %v20 = vsel %vm19, %v15, 0.0
    %v21 = vsel %vm19, %v16, 0.0
    %v22 = vadd.f32 %v20, %v21
    %v23 = vrot.slane %v22, 4
    %v24 = vadd.f32 %v22, %v23
    %v25 = vrot.slane %v24, 2
    %v26 = vadd.f32 %v24, %v25
    %v27 = vrot.slane %v26, 1
    %v28 = vadd.f32 %v26, %v27
    %v29 = vsel %vm19, %v17, 0.0
    %v30 = vsel %vm19, %v18, 0.0
    %v31 = vadd.f32 %v29, %v30
    %v32 = vrot.slane %v31, 4
    %v33 = vadd.f32 %v31, %v32
    %v34 = vrot.slane %v33, 2
    %v35 = vadd.f32 %v33, %v34
    %v36 = vrot.slane %v35, 1
    %v37 = vadd.f32 %v35, %v36
    %v38 = vrcp.pop 16.0
    %v39 = vmul.f32 %v28, %v38
    %v40 = vmul.f32 %v37, %v38
    %v41 = vld [vmem:[%s1] sm:$0xff]
    %v42 = vld [vmem:[%s1 + $0x8] sm:$0xff]
    %v43 = vld [vmem:[%s2] sm:$0x1]
    %v45 = vlaneseq
    %v46 = vshrl.u32 %v45, 7
    %v47 = vsub.s32 0, %v46
    %v48 = vrot.slane %v43, %v47
    %vm52 = vcmask 1041409
    %v53 = vsel %vm52, %v40, %v39
    %v54 = vsel %vm19, %v53, 0
    %56 = vmatprep.subr.mxu0 0.0
    %57 = vmatpush1.msra.mxu0 0.0
    %58 = vmatprep.subr.mxu0 0.0
    %59 = vmatpush1.msra.mxu0 0.0
    %60 = vmatprep.subr.mxu0 0.0
    %61 = vmatpush1.msra.mxu0 0.0
    %62 = vmatprep.subr.mxu0 0.0
    %63 = vmatpush1.msra.mxu0 0.0
    %64 = vmatprep.subr.mxu0 0.0
    %65 = vmatpush1.msra.mxu0 0.0
    %66 = vmatprep.subr.mxu0 0.0
    %67 = vmatpush1.msra.mxu0 0.0
    %68 = vmatprep.subr.mxu0 0.0
    %69 = vmatpush1.msra.mxu0 0.0
    %70 = vmatprep.subr.mxu0 0.0
    %71 = vmatpush1.msra.mxu0 0.0
    %72 = vmatprep.subr.mxu0 0.0
    %73 = vmatpush1.msra.mxu0 0.0
    %74 = vmatprep.subr.mxu0 0.0
    %75 = vmatpush1.msra.mxu0 0.0
    %76 = vmatprep.subr.mxu0 0.0
    %77 = vmatpush1.msra.mxu0 0.0
    %78 = vmatprep.subr.mxu0 0.0
    %79 = vmatpush1.msra.mxu0 0.0
    %80 = vmatprep.subr.mxu0 0.0
    %81 = vmatpush1.msra.mxu0 0.0
    %82 = vmatprep.subr.mxu0 0.0
    %83 = vmatpush1.msra.mxu0 0.0
    %84 = vmatprep.subr.mxu0 0.0
    %85 = vmatpush1.msra.mxu0 %v42
    %86 = vmatprep.subr.mxu0 0.0
    %87 = vmatpush1.msra.mxu0 %v41
    %88 = vmatprep.subr.mxu0 0.0
    %89 = vmatpush2.msra.mxu0 0.0
    %90 = vmatprep.subr.mxu0 0.0
    %91 = vmatpush2.msra.mxu0 0.0
    %92 = vmatprep.subr.mxu0 0.0
    %93 = vmatpush2.msra.mxu0 0.0
    %94 = vmatprep.subr.mxu0 0.0
    %95 = vmatpush2.msra.mxu0 0.0
    %96 = vmatprep.subr.mxu0 0.0
    %97 = vmatpush2.msra.mxu0 0.0
    %98 = vmatprep.subr.mxu0 0.0
    %99 = vmatpush2.msra.mxu0 0.0
    %100 = vmatprep.subr.mxu0 0.0
    %101 = vmatpush2.msra.mxu0 0.0
    %102 = vmatprep.subr.mxu0 0.0
    %103 = vmatpush2.msra.mxu0 0.0
    %104 = vmatprep.subr.mxu0 0.0
    %105 = vmatpush2.msra.mxu0 0.0
    %106 = vmatprep.subr.mxu0 0.0
    %107 = vmatpush2.msra.mxu0 0.0
    %108 = vmatprep.subr.mxu0 0.0
    %109 = vmatpush2.msra.mxu0 0.0
    %110 = vmatprep.subr.mxu0 0.0
    %111 = vmatpush2.msra.mxu0 0.0
    %112 = vmatprep.subr.mxu0 0.0
    %113 = vmatpush2.msra.mxu0 0.0
    %114 = vmatprep.subr.mxu0 0.0
    %115 = vmatpush2.msra.mxu0 0.0
    %116 = vmatprep.subr.mxu0 0.0
    %117 = vmatpush2.msra.mxu0 0.0
    %118 = vmatprep.subr.mxu0 0.0
    %119 = vmatpush2.msra.mxu0 0.0
    %120 = vmatprep.mubr.f32.mxu0 0.0
    %121 = vmatmul.mubr.f32.gmra.mxu0 %v54
    %v122 = vpop.f32.mrf.mxu0
    %v123 = vadd.f32 %v48, %v122
    %v124 = vpop.f32.mrf.mxu0
    %125 = vdwg.mxu0
    %vm126 = vcmask 74752
    %127 = vst.msk [vmem:[#allocation2] sm:$0x3] %vm126, %v123
    // Predicated region
    $region14: #{_lambda_.21} parent=1 // pred_check
      _
    $region15: #{_lambda_.21} parent=1 // pred_check_branch
      %129 = sbr.rel (0) target = $region17
    $region16: #{_lambda_.21} parent=1 // pred_region
      %s131 = ssub.s32 32, 32
      %132 = vsyncadd [#allocation3], %s131
      %s134 = sshll.u32 [#allocation2], 4
      %s135 = int_to_ptr.vmem [resolvable:$true] %s134
      %137 = dma.vmem_to_hbm [thread:$0]  %s135, 32, %s3, [#allocation3]
    $region17: #{_lambda_.21} parent=1 // pred_fallthru
      _
    // Predicated region
    $region18: #{_lambda_.21} parent=1 // pred_check
      _
    $region19: #{_lambda_.21} parent=1 // pred_check_branch
      %139 = sbr.rel (0) target = $region21
    $region20: #{_lambda_.21} parent=1 // pred_region
      %140 = dma.done [#allocation3], 32
    $region21: #{_lambda_.21} parent=1 // pred_fallthru
      _
    %141 = vsyncpa [#allocation3], 1

// kernel: _lambda_.20
$region0: #{_lambda_.20}
  #allocation0 [shape = 'u32[]', space=smem, size = 0x4, offset = 0x4, fixed_abs, tag = 'smem constant byte address 0x4 - core index']
  #allocation1 [shape = 'u32[144,128]{1,0:T(1,128)}', space=vmem, size = 0x12000, scoped, tag = 'internal scratch']
  %s0 = inlined_call_operand.vmem [shape: f32[2,64,16], index: 0, kind: input, shape index: {}]
  %s1 = inlined_call_operand.vmem [shape: f32[16,10], index: 1, kind: input, shape index: {}]
  %s2 = inlined_call_operand.vmem [shape: f32[1,10], index: 2, kind: input, shape index: {}]
  %s3 = inlined_call_operand.hbm [shape: f32[2,10], index: 3, kind: output, shape index: {}]
  %s4 = sld [smem:[#allocation0]]
  $region22: #{_lambda_.20} parent=0
    _
  %s6 = ssub.s32 1, %s4
  %s7 = scalar_select 0, %s6, %s4
  $region1: #{_lambda_.20} parent=0
    #allocation2 [shape = 'u8[1024]{0}', space=vmem, size = 0x400, scoped, tag = 'output window, operand 0, single buffered']
    #allocation3 [shape = 's32[1]{0}', space=sflag, size = 0x4, scoped, tag = 'scoped memory for _lambda_.20']
    %8 = vsyncpa [#allocation3], 0
    // Predicated region
    $region2: #{_lambda_.20} parent=1 // pred_check
      _
    $region3: #{_lambda_.20} parent=1 // pred_check_branch
      %10 = sbr.rel (0) target = $region5
    $region4: #{_lambda_.20} parent=1 // pred_region
      _
    $region5: #{_lambda_.20} parent=1 // pred_fallthru
      _
    // Predicated region
    $region6: #{_lambda_.20} parent=1 // pred_check
      _
    $region7: #{_lambda_.20} parent=1 // pred_check_branch
      %12 = sbr.rel (0) target = $region9
    $region8: #{_lambda_.20} parent=1 // pred_region
      _
    $region9: #{_lambda_.20} parent=1 // pred_fallthru
      _
    // Predicated region
    $region10: #{_lambda_.20} parent=1 // pred_check
      _
    $region11: #{_lambda_.20} parent=1 // pred_check_branch
      %14 = sbr.rel (0) target = $region13
    $region12: #{_lambda_.20} parent=1 // pred_region
      _
    $region13: #{_lambda_.20} parent=1 // pred_fallthru
      _
    %v15 = vld [vmem:[%s0] sm:$0xff]
    %v16 = vld [vmem:[%s0 + $0x8] sm:$0xff]
    %v17 = vld [vmem:[%s0 + $0x10] sm:$0xff]
    %v18 = vld [vmem:[%s0 + $0x18] sm:$0xff]
    %v19 = vld [vmem:[%s0 + $0x20] sm:$0xff]
    %v20 = vld [vmem:[%s0 + $0x28] sm:$0xff]
    %v21 = vld [vmem:[%s0 + $0x30] sm:$0xff]
    %v22 = vld [vmem:[%s0 + $0x38] sm:$0xff]
    %v23 = vld [vmem:[%s0 + $0x40] sm:$0xff]
    %v24 = vld [vmem:[%s0 + $0x48] sm:$0xff]
    %v25 = vld [vmem:[%s0 + $0x50] sm:$0xff]
    %v26 = vld [vmem:[%s0 + $0x58] sm:$0xff]
    %v27 = vld [vmem:[%s0 + $0x60] sm:$0xff]
    %v28 = vld [vmem:[%s0 + $0x68] sm:$0xff]
    %v29 = vld [vmem:[%s0 + $0x70] sm:$0xff]
    %v30 = vld [vmem:[%s0 + $0x78] sm:$0xff]
    %vm31 = vcmask 130048
    %v32 = vsel %vm31, %v15, 0.0
    %v33 = vsel %vm31, %v16, 0.0
    %v34 = vadd.f32 %v32, %v33
    %v35 = vsel %vm31, %v17, 0.0
    %v36 = vadd.f32 %v34, %v35
    %v37 = vsel %vm31, %v18, 0.0
    %v38 = vadd.f32 %v36, %v37
    %v39 = vsel %vm31, %v19, 0.0
    %v40 = vadd.f32 %v38, %v39
    %v41 = vsel %vm31, %v20, 0.0
    %v42 = vadd.f32 %v40, %v41
    %v43 = vsel %vm31, %v21, 0.0
    %v44 = vadd.f32 %v42, %v43
    %v45 = vsel %vm31, %v22, 0.0
    %v46 = vadd.f32 %v44, %v45
    %v47 = vrot.slane %v46, 4
    %v48 = vadd.f32 %v46, %v47
    %v49 = vrot.slane %v48, 2
    %v50 = vadd.f32 %v48, %v49
    %v51 = vrot.slane %v50, 1
    %v52 = vadd.f32 %v50, %v51
    %v53 = vsel %vm31, %v23, 0.0
    %v54 = vsel %vm31, %v24, 0.0
    %v55 = vadd.f32 %v53, %v54
    %v56 = vsel %vm31, %v25, 0.0
    %v57 = vadd.f32 %v55, %v56
    %v58 = vsel %vm31, %v26, 0.0
    %v59 = vadd.f32 %v57, %v58
    %v60 = vsel %vm31, %v27, 0.0
    %v61 = vadd.f32 %v59, %v60
    %v62 = vsel %vm31, %v28, 0.0
    %v63 = vadd.f32 %v61, %v62
    %v64 = vsel %vm31, %v29, 0.0
    %v65 = vadd.f32 %v63, %v64
    %v66 = vsel %vm31, %v30, 0.0
    %v67 = vadd.f32 %v65, %v66
    %v68 = vrot.slane %v67, 4
    %v69 = vadd.f32 %v67, %v68
    %v70 = vrot.slane %v69, 2
    %v71 = vadd.f32 %v69, %v70
    %v72 = vrot.slane %v71, 1
    %v73 = vadd.f32 %v71, %v72
    %v74 = vrcp.pop 64.0
    %v75 = vmul.f32 %v52, %v74
    %v76 = vmul.f32 %v73, %v74
    %v77 = vld [vmem:[%s1] sm:$0xff]
    %v78 = vld [vmem:[%s1 + $0x8] sm:$0xff]
    %v79 = vld [vmem:[%s2] sm:$0x1]
    %v81 = vlaneseq
    %v82 = vshrl.u32 %v81, 7
    %v83 = vsub.s32 0, %v82
    %v84 = vrot.slane %v79, %v83
    %vm88 = vcmask 1041409
    %v89 = vsel %vm88, %v76, %v75
    %v90 = vsel %vm31, %v89, 0
    %92 = vmatprep.subr.mxu0 0.0
    %93 = vmatpush1.msra.mxu0 0.0
    %94 = vmatprep.subr.mxu0 0.0
    %95 = vmatpush1.msra.mxu0 0.0
    %96 = vmatprep.subr.mxu0 0.0
    %97 = vmatpush1.msra.mxu0 0.0
    %98 = vmatprep.subr.mxu0 0.0
    %99 = vmatpush1.msra.mxu0 0.0
    %100 = vmatprep.subr.mxu0 0.0
    %101 = vmatpush1.msra.mxu0 0.0
    %102 = vmatprep.subr.mxu0 0.0
    %103 = vmatpush1.msra.mxu0 0.0
    %104 = vmatprep.subr.mxu0 0.0
    %105 = vmatpush1.msra.mxu0 0.0
    %106 = vmatprep.subr.mxu0 0.0
    %107 = vmatpush1.msra.mxu0 0.0
    %108 = vmatprep.subr.mxu0 0.0
    %109 = vmatpush1.msra.mxu0 0.0
    %110 = vmatprep.subr.mxu0 0.0
    %111 = vmatpush1.msra.mxu0 0.0
    %112 = vmatprep.subr.mxu0 0.0
    %113 = vmatpush1.msra.mxu0 0.0
    %114 = vmatprep.subr.mxu0 0.0
    %115 = vmatpush1.msra.mxu0 0.0
    %116 = vmatprep.subr.mxu0 0.0
    %117 = vmatpush1.msra.mxu0 0.0
    %118 = vmatprep.subr.mxu0 0.0
    %119 = vmatpush1.msra.mxu0 0.0
    %120 = vmatprep.subr.mxu0 0.0
    %121 = vmatpush1.msra.mxu0 %v78
    %122 = vmatprep.subr.mxu0 0.0
    %123 = vmatpush1.msra.mxu0 %v77
    %124 = vmatprep.subr.mxu0 0.0
    %125 = vmatpush2.msra.mxu0 0.0
    %126 = vmatprep.subr.mxu0 0.0
    %127 = vmatpush2.msra.mxu0 0.0
    %128 = vmatprep.subr.mxu0 0.0
    %129 = vmatpush2.msra.mxu0 0.0
    %130 = vmatprep.subr.mxu0 0.0
    %131 = vmatpush2.msra.mxu0 0.0
    %132 = vmatprep.subr.mxu0 0.0
    %133 = vmatpush2.msra.mxu0 0.0
    %134 = vmatprep.subr.mxu0 0.0
    %135 = vmatpush2.msra.mxu0 0.0
    %136 = vmatprep.subr.mxu0 0.0
    %137 = vmatpush2.msra.mxu0 0.0
    %138 = vmatprep.subr.mxu0 0.0
    %139 = vmatpush2.msra.mxu0 0.0
    %140 = vmatprep.subr.mxu0 0.0
    %141 = vmatpush2.msra.mxu0 0.0
    %142 = vmatprep.subr.mxu0 0.0
    %143 = vmatpush2.msra.mxu0 0.0
    %144 = vmatprep.subr.mxu0 0.0
    %145 = vmatpush2.msra.mxu0 0.0
    %146 = vmatprep.subr.mxu0 0.0
    %147 = vmatpush2.msra.mxu0 0.0
    %148 = vmatprep.subr.mxu0 0.0
    %149 = vmatpush2.msra.mxu0 0.0
    %150 = vmatprep.subr.mxu0 0.0
    %151 = vmatpush2.msra.mxu0 0.0
    %152 = vmatprep.subr.mxu0 0.0
    %153 = vmatpush2.msra.mxu0 0.0
    %154 = vmatprep.subr.mxu0 0.0
    %155 = vmatpush2.msra.mxu0 0.0
    %156 = vmatprep.mubr.f32.mxu0 0.0
    %157 = vmatmul.mubr.f32.gmra.mxu0 %v90
    %v158 = vpop.f32.mrf.mxu0
    %v159 = vadd.f32 %v84, %v158
    %v160 = vpop.f32.mrf.mxu0
    %161 = vdwg.mxu0
    %vm162 = vcmask 74752
    %163 = vst.msk [vmem:[#allocation2] sm:$0x3] %vm162, %v159
    // Predicated region
    $region14: #{_lambda_.20} parent=1 // pred_check
      _
    $region15: #{_lambda_.20} parent=1 // pred_check_branch
      %165 = sbr.rel (0) target = $region17
    $region16: #{_lambda_.20} parent=1 // pred_region
      %s167 = ssub.s32 32, 32
      %168 = vsyncadd [#allocation3], %s167
      %s170 = sshll.u32 [#allocation2], 4
      %s171 = int_to_ptr.vmem [resolvable:$true] %s170
      %173 = dma.vmem_to_hbm [thread:$0]  %s171, 32, %s3, [#allocation3]
    $region17: #{_lambda_.20} parent=1 // pred_fallthru
      _
    // Predicated region
    $region18: #{_lambda_.20} parent=1 // pred_check
      _
    $region19: #{_lambda_.20} parent=1 // pred_check_branch
      %175 = sbr.rel (0) target = $region21
    $region20: #{_lambda_.20} parent=1 // pred_region
      %176 = dma.done [#allocation3], 32
    $region21: #{_lambda_.20} parent=1 // pred_fallthru
      _
    %177 = vsyncpa [#allocation3], 1

// kernel: _lambda_.19
$region0: #{_lambda_.19}
  #allocation0 [shape = 'u32[]', space=smem, size = 0x4, offset = 0x4, fixed_abs, tag = 'smem constant byte address 0x4 - core index']
  #allocation1 [shape = 'u32[144,128]{1,0:T(1,128)}', space=vmem, size = 0x12000, scoped, tag = 'internal scratch']
  %s0 = inlined_call_operand.vmem [shape: f32[2,256,8], index: 0, kind: input, shape index: {}]
  %s1 = inlined_call_operand.vmem [shape: f32[8,10], index: 1, kind: input, shape index: {}]
  %s2 = inlined_call_operand.vmem [shape: f32[1,10], index: 2, kind: input, shape index: {}]
  %s3 = inlined_call_operand.hbm [shape: f32[2,10], index: 3, kind: output, shape index: {}]
  %s4 = sld [smem:[#allocation0]]
  $region22: #{_lambda_.19} parent=0
    _
  %s6 = ssub.s32 1, %s4
  %s7 = scalar_select 0, %s6, %s4
  $region1: #{_lambda_.19} parent=0
    #allocation2 [shape = 'u8[1024]{0}', space=vmem, size = 0x400, scoped, tag = 'output window, operand 0, single buffered']
    #allocation3 [shape = 's32[1]{0}', space=sflag, size = 0x4, scoped, tag = 'scoped memory for _lambda_.19']
    %8 = vsyncpa [#allocation3], 0
    // Predicated region
    $region2: #{_lambda_.19} parent=1 // pred_check
      _
    $region3: #{_lambda_.19} parent=1 // pred_check_branch
      %10 = sbr.rel (0) target = $region5
    $region4: #{_lambda_.19} parent=1 // pred_region
      _
    $region5: #{_lambda_.19} parent=1 // pred_fallthru
      _
    // Predicated region
    $region6: #{_lambda_.19} parent=1 // pred_check
      _
    $region7: #{_lambda_.19} parent=1 // pred_check_branch
      %12 = sbr.rel (0) target = $region9
    $region8: #{_lambda_.19} parent=1 // pred_region
      _
    $region9: #{_lambda_.19} parent=1 // pred_fallthru
      _
    // Predicated region
    $region10: #{_lambda_.19} parent=1 // pred_check
      _
    $region11: #{_lambda_.19} parent=1 // pred_check_branch
      %14 = sbr.rel (0) target = $region13
    $region12: #{_lambda_.19} parent=1 // pred_region
      _
    $region13: #{_lambda_.19} parent=1 // pred_fallthru
      _
    %v15 = vld [vmem:[%s0] sm:$0xff]
    %v16 = vld [vmem:[%s0 + $0x8] sm:$0xff]
    %v17 = vld [vmem:[%s0 + $0x10] sm:$0xff]
    %v18 = vld [vmem:[%s0 + $0x18] sm:$0xff]
    %v19 = vld [vmem:[%s0 + $0x20] sm:$0xff]
    %v20 = vld [vmem:[%s0 + $0x28] sm:$0xff]
    %v21 = vld [vmem:[%s0 + $0x30] sm:$0xff]
    %v22 = vld [vmem:[%s0 + $0x38] sm:$0xff]
    %v23 = vld [vmem:[%s0 + $0x40] sm:$0xff]
    %v24 = vld [vmem:[%s0 + $0x48] sm:$0xff]
    %v25 = vld [vmem:[%s0 + $0x50] sm:$0xff]
    %v26 = vld [vmem:[%s0 + $0x58] sm:$0xff]
    %v27 = vld [vmem:[%s0 + $0x60] sm:$0xff]
    %v28 = vld [vmem:[%s0 + $0x68] sm:$0xff]
    %v29 = vld [vmem:[%s0 + $0x70] sm:$0xff]
    %v30 = vld [vmem:[%s0 + $0x78] sm:$0xff]
    %v31 = vld [vmem:[%s0 + $0x80] sm:$0xff]
    %v32 = vld [vmem:[%s0 + $0x88] sm:$0xff]
    %v33 = vld [vmem:[%s0 + $0x90] sm:$0xff]
    %v34 = vld [vmem:[%s0 + $0x98] sm:$0xff]
    %v35 = vld [vmem:[%s0 + $0xa0] sm:$0xff]
    %v36 = vld [vmem:[%s0 + $0xa8] sm:$0xff]
    %v37 = vld [vmem:[%s0 + $0xb0] sm:$0xff]
    %v38 = vld [vmem:[%s0 + $0xb8] sm:$0xff]
    %v39 = vld [vmem:[%s0 + $0xc0] sm:$0xff]
    %v40 = vld [vmem:[%s0 + $0xc8] sm:$0xff]
    %v41 = vld [vmem:[%s0 + $0xd0] sm:$0xff]
    %v42 = vld [vmem:[%s0 + $0xd8] sm:$0xff]
    %v43 = vld [vmem:[%s0 + $0xe0] sm:$0xff]
    %v44 = vld [vmem:[%s0 + $0xe8] sm:$0xff]
    %v45 = vld [vmem:[%s0 + $0xf0] sm:$0xff]
    %v46 = vld [vmem:[%s0 + $0xf8] sm:$0xff]
    %v47 = vld [vmem:[%s0 + $0x100] sm:$0xff]
    %v48 = vld [vmem:[%s0 + $0x108] sm:$0xff]
    %v49 = vld [vmem:[%s0 + $0x110] sm:$0xff]
    %v50 = vld [vmem:[%s0 + $0x118] sm:$0xff]
    %v51 = vld [vmem:[%s0 + $0x120] sm:$0xff]
    %v52 = vld [vmem:[%s0 + $0x128] sm:$0xff]
    %v53 = vld [vmem:[%s0 + $0x130] sm:$0xff]
    %v54 = vld [vmem:[%s0 + $0x138] sm:$0xff]
    %v55 = vld [vmem:[%s0 + $0x140] sm:$0xff]
    %v56 = vld [vmem:[%s0 + $0x148] sm:$0xff]
    %v57 = vld [vmem:[%s0 + $0x150] sm:$0xff]
    %v58 = vld [vmem:[%s0 + $0x158] sm:$0xff]
    %v59 = vld [vmem:[%s0 + $0x160] sm:$0xff]
    %v60 = vld [vmem:[%s0 + $0x168] sm:$0xff]
    %v61 = vld [vmem:[%s0 + $0x170] sm:$0xff]
    %v62 = vld [vmem:[%s0 + $0x178] sm:$0xff]
    %v63 = vld [vmem:[%s0 + $0x180] sm:$0xff]
    %v64 = vld [vmem:[%s0 + $0x188] sm:$0xff]
    %v65 = vld [vmem:[%s0 + $0x190] sm:$0xff]
    %v66 = vld [vmem:[%s0 + $0x198] sm:$0xff]
    %v67 = vld [vmem:[%s0 + $0x1a0] sm:$0xff]
    %v68 = vld [vmem:[%s0 + $0x1a8] sm:$0xff]
    %v69 = vld [vmem:[%s0 + $0x1b0] sm:$0xff]
    %v70 = vld [vmem:[%s0 + $0x1b8] sm:$0xff]
    %v71 = vld [vmem:[%s0 + $0x1c0] sm:$0xff]
    %v72 = vld [vmem:[%s0 + $0x1c8] sm:$0xff]
    %v73 = vld [vmem:[%s0 + $0x1d0] sm:$0xff]
    %v74 = vld [vmem:[%s0 + $0x1d8] sm:$0xff]
    %v75 = vld [vmem:[%s0 + $0x1e0] sm:$0xff]
    %v76 = vld [vmem:[%s0 + $0x1e8] sm:$0xff]
    %v77 = vld [vmem:[%s0 + $0x1f0] sm:$0xff]
    %v78 = vld [vmem:[%s0 + $0x1f8] sm:$0xff]
    %vm79 = vcmask 64512
    %v80 = vsel %vm79, %v15, 0.0
    %v81 = vsel %vm79, %v16, 0.0
    %v82 = vadd.f32 %v80, %v81
    %v83 = vsel %vm79, %v17, 0.0
    %v84 = vadd.f32 %v82, %v83
    %v85 = vsel %vm79, %v18, 0.0
    %v86 = vadd.f32 %v84, %v85
    %v87 = vsel %vm79, %v19, 0.0
    %v88 = vadd.f32 %v86, %v87
    %v89 = vsel %vm79, %v20, 0.0
    %v90 = vadd.f32 %v88, %v89
    %v91 = vsel %vm79, %v21, 0.0
    %v92 = vadd.f32 %v90, %v91
    %v93 = vsel %vm79, %v22, 0.0
    %v94 = vadd.f32 %v92, %v93
    %v95 = vsel %vm79, %v23, 0.0
    %v96 = vadd.f32 %v94, %v95
    %v97 = vsel %vm79, %v24, 0.0
    %v98 = vadd.f32 %v96, %v97
    %v99 = vsel %vm79, %v25, 0.0
    %v100 = vadd.f32 %v98, %v99
    %v101 = vsel %vm79, %v26, 0.0
    %v102 = vadd.f32 %v100, %v101
    %v103 = vsel %vm79, %v27, 0.0
    %v104 = vadd.f32 %v102, %v103
    %v105 = vsel %vm79, %v28, 0.0
    %v106 = vadd.f32 %v104, %v105
    %v107 = vsel %vm79, %v29, 0.0
    %v108 = vadd.f32 %v106, %v107
    %v109 = vsel %vm79, %v30, 0.0
    %v110 = vadd.f32 %v108, %v109
    %v111 = vsel %vm79, %v31, 0.0
    %v112 = vadd.f32 %v110, %v111
    %v113 = vsel %vm79, %v32, 0.0
    %v114 = vadd.f32 %v112, %v113
    %v115 = vsel %vm79, %v33, 0.0
    %v116 = vadd.f32 %v114, %v115
    %v117 = vsel %vm79, %v34, 0.0
    %v118 = vadd.f32 %v116, %v117
    %v119 = vsel %vm79, %v35, 0.0
    %v120 = vadd.f32 %v118, %v119
    %v121 = vsel %vm79, %v36, 0.0
    %v122 = vadd.f32 %v120, %v121
    %v123 = vsel %vm79, %v37, 0.0
    %v124 = vadd.f32 %v122, %v123
    %v125 = vsel %vm79, %v38, 0.0
    %v126 = vadd.f32 %v124, %v125
    %v127 = vsel %vm79, %v39, 0.0
    %v128 = vadd.f32 %v126, %v127
    %v129 = vsel %vm79, %v40, 0.0
    %v130 = vadd.f32 %v128, %v129
    %v131 = vsel %vm79, %v41, 0.0
    %v132 = vadd.f32 %v130, %v131
    %v133 = vsel %vm79, %v42, 0.0
    %v134 = vadd.f32 %v132, %v133
    %v135 = vsel %vm79, %v43, 0.0
    %v136 = vadd.f32 %v134, %v135
    %v137 = vsel %vm79, %v44, 0.0
    %v138 = vadd.f32 %v136, %v137
    %v139 = vsel %vm79, %v45, 0.0
    %v140 = vadd.f32 %v138, %v139
    %v141 = vsel %vm79, %v46, 0.0
    %v142 = vadd.f32 %v140, %v141
    %v143 = vrot.slane %v142, 4
    %v144 = vadd.f32 %v142, %v143
    %v145 = vrot.slane %v144, 2
    %v146 = vadd.f32 %v144, %v145
    %v147 = vrot.slane %v146, 1
    %v148 = vadd.f32 %v146, %v147
    %v149 = vsel %vm79, %v47, 0.0
    %v150 = vsel %vm79, %v48, 0.0
    %v151 = vadd.f32 %v149, %v150
    %v152 = vsel %vm79, %v49, 0.0
    %v153 = vadd.f32 %v151, %v152
    %v154 = vsel %vm79, %v50, 0.0
    %v155 = vadd.f32 %v153, %v154
    %v156 = vsel %vm79, %v51, 0.0
    %v157 = vadd.f32 %v155, %v156
    %v158 = vsel %vm79, %v52, 0.0
    %v159 = vadd.f32 %v157, %v158
    %v160 = vsel %vm79, %v53, 0.0
    %v161 = vadd.f32 %v159, %v160
    %v162 = vsel %vm79, %v54, 0.0
    %v163 = vadd.f32 %v161, %v162
    %v164 = vsel %vm79, %v55, 0.0
    %v165 = vadd.f32 %v163, %v164
    %v166 = vsel %vm79, %v56, 0.0
    %v167 = vadd.f32 %v165, %v166
    %v168 = vsel %vm79, %v57, 0.0
    %v169 = vadd.f32 %v167, %v168
    %v170 = vsel %vm79, %v58, 0.0
    %v171 = vadd.f32 %v169, %v170
    %v172 = vsel %vm79, %v59, 0.0
    %v173 = vadd.f32 %v171, %v172
    %v174 = vsel %vm79, %v60, 0.0
    %v175 = vadd.f32 %v173, %v174
    %v176 = vsel %vm79, %v61, 0.0
    %v177 = vadd.f32 %v175, %v176
    %v178 = vsel %vm79, %v62, 0.0
    %v179 = vadd.f32 %v177, %v178
    %v180 = vsel %vm79, %v63, 0.0
    %v181 = vadd.f32 %v179, %v180
    %v182 = vsel %vm79, %v64, 0.0
    %v183 = vadd.f32 %v181, %v182
    %v184 = vsel %vm79, %v65, 0.0
    %v185 = vadd.f32 %v183, %v184
    %v186 = vsel %vm79, %v66, 0.0
    %v187 = vadd.f32 %v185, %v186
    %v188 = vsel %vm79, %v67, 0.0
    %v189 = vadd.f32 %v187, %v188
    %v190 = vsel %vm79, %v68, 0.0
    %v191 = vadd.f32 %v189, %v190
    %v192 = vsel %vm79, %v69, 0.0
    %v193 = vadd.f32 %v191, %v192
    %v194 = vsel %vm79, %v70, 0.0
    %v195 = vadd.f32 %v193, %v194
    %v196 = vsel %vm79, %v71, 0.0
    %v197 = vadd.f32 %v195, %v196
    %v198 = vsel %vm79, %v72, 0.0
    %v199 = vadd.f32 %v197, %v198
    %v200 = vsel %vm79, %v73, 0.0
    %v201 = vadd.f32 %v199, %v200
    %v202 = vsel %vm79, %v74, 0.0
    %v203 = vadd.f32 %v201, %v202
    %v204 = vsel %vm79, %v75, 0.0
    %v205 = vadd.f32 %v203, %v204
    %v206 = vsel %vm79, %v76, 0.0
    %v207 = vadd.f32 %v205, %v206
    %v208 = vsel %vm79, %v77, 0.0
    %v209 = vadd.f32 %v207, %v208
    %v210 = vsel %vm79, %v78, 0.0
    %v211 = vadd.f32 %v209, %v210
    %v212 = vrot.slane %v211, 4
    %v213 = vadd.f32 %v211, %v212
    %v214 = vrot.slane %v213, 2
    %v215 = vadd.f32 %v213, %v214
    %v216 = vrot.slane %v215, 1
    %v217 = vadd.f32 %v215, %v216
    %v218 = vrcp.pop 256.0
    %v219 = vmul.f32 %v148, %v218
    %v220 = vmul.f32 %v217, %v218
    %v221 = vld [vmem:[%s1] sm:$0xff]
    %v222 = vld [vmem:[%s2] sm:$0x1]
    %v224 = vlaneseq
    %v225 = vshrl.u32 %v224, 7
    %v226 = vsub.s32 0, %v225
    %v227 = vrot.slane %v222, %v226
    %vm231 = vcmask 1041409
    %v232 = vsel %vm231, %v220, %v219
    %v233 = vsel %vm79, %v232, 0
    %235 = vmatprep.subr.mxu0 0.0
    %236 = vmatpush1.msra.mxu0 0.0
    %237 = vmatprep.subr.mxu0 0.0
    %238 = vmatpush1.msra.mxu0 0.0
    %239 = vmatprep.subr.mxu0 0.0
    %240 = vmatpush1.msra.mxu0 0.0
    %241 = vmatprep.subr.mxu0 0.0
    %242 = vmatpush1.msra.mxu0 0.0
    %243 = vmatprep.subr.mxu0 0.0
    %244 = vmatpush1.msra.mxu0 0.0
    %245 = vmatprep.subr.mxu0 0.0
    %246 = vmatpush1.msra.mxu0 0.0
    %247 = vmatprep.subr.mxu0 0.0
    %248 = vmatpush1.msra.mxu0 0.0
    %249 = vmatprep.subr.mxu0 0.0
    %250 = vmatpush1.msra.mxu0 0.0
    %251 = vmatprep.subr.mxu0 0.0
    %252 = vmatpush1.msra.mxu0 0.0
    %253 = vmatprep.subr.mxu0 0.0
    %254 = vmatpush1.msra.mxu0 0.0
    %255 = vmatprep.subr.mxu0 0.0
    %256 = vmatpush1.msra.mxu0 0.0
    %257 = vmatprep.subr.mxu0 0.0
    %258 = vmatpush1.msra.mxu0 0.0
    %259 = vmatprep.subr.mxu0 0.0
    %260 = vmatpush1.msra.mxu0 0.0
    %261 = vmatprep.subr.mxu0 0.0
    %262 = vmatpush1.msra.mxu0 0.0
    %263 = vmatprep.subr.mxu0 0.0
    %264 = vmatpush1.msra.mxu0 0.0
    %265 = vmatprep.subr.mxu0 0.0
    %266 = vmatpush1.msra.mxu0 %v221
    %267 = vmatprep.subr.mxu0 0.0
    %268 = vmatpush2.msra.mxu0 0.0
    %269 = vmatprep.subr.mxu0 0.0
    %270 = vmatpush2.msra.mxu0 0.0
    %271 = vmatprep.subr.mxu0 0.0
    %272 = vmatpush2.msra.mxu0 0.0
    %273 = vmatprep.subr.mxu0 0.0
    %274 = vmatpush2.msra.mxu0 0.0
    %275 = vmatprep.subr.mxu0 0.0
    %276 = vmatpush2.msra.mxu0 0.0
    %277 = vmatprep.subr.mxu0 0.0
    %278 = vmatpush2.msra.mxu0 0.0
    %279 = vmatprep.subr.mxu0 0.0
    %280 = vmatpush2.msra.mxu0 0.0
    %281 = vmatprep.subr.mxu0 0.0
    %282 = vmatpush2.msra.mxu0 0.0
    %283 = vmatprep.subr.mxu0 0.0
    %284 = vmatpush2.msra.mxu0 0.0
    %285 = vmatprep.subr.mxu0 0.0
    %286 = vmatpush2.msra.mxu0 0.0
    %287 = vmatprep.subr.mxu0 0.0
    %288 = vmatpush2.msra.mxu0 0.0
    %289 = vmatprep.subr.mxu0 0.0
    %290 = vmatpush2.msra.mxu0 0.0
    %291 = vmatprep.subr.mxu0 0.0
    %292 = vmatpush2.msra.mxu0 0.0
    %293 = vmatprep.subr.mxu0 0.0
    %294 = vmatpush2.msra.mxu0 0.0
    %295 = vmatprep.subr.mxu0 0.0
    %296 = vmatpush2.msra.mxu0 0.0
    %297 = vmatprep.subr.mxu0 0.0
    %298 = vmatpush2.msra.mxu0 0.0
    %299 = vmatprep.mubr.f32.mxu0 0.0
    %300 = vmatmul.mubr.f32.gmra.mxu0 %v233
    %v301 = vpop.f32.mrf.mxu0
    %v302 = vadd.f32 %v227, %v301
    %v303 = vpop.f32.mrf.mxu0
    %304 = vdwg.mxu0
    %vm305 = vcmask 74752
    %306 = vst.msk [vmem:[#allocation2] sm:$0x3] %vm305, %v302
    // Predicated region
    $region14: #{_lambda_.19} parent=1 // pred_check
      _
    $region15: #{_lambda_.19} parent=1 // pred_check_branch
      %308 = sbr.rel (0) target = $region17
    $region16: #{_lambda_.19} parent=1 // pred_region
      %s310 = ssub.s32 32, 32
      %311 = vsyncadd [#allocation3], %s310
      %s313 = sshll.u32 [#allocation2], 4
      %s314 = int_to_ptr.vmem [resolvable:$true] %s313
      %316 = dma.vmem_to_hbm [thread:$0]  %s314, 32, %s3, [#allocation3]
    $region17: #{_lambda_.19} parent=1 // pred_fallthru
      _
    // Predicated region
    $region18: #{_lambda_.19} parent=1 // pred_check
      _
    $region19: #{_lambda_.19} parent=1 // pred_check_branch
      %318 = sbr.rel (0) target = $region21
    $region20: #{_lambda_.19} parent=1 // pred_region
      %319 = dma.done [#allocation3], 32
    $region21: #{_lambda_.19} parent=1 // pred_fallthru
      _
    %320 = vsyncpa [#allocation3], 1

</llo_original>
